<compile_context>
chip_gen: v7x
topology: tpu7x:2x2x1
jax: 0.10.0
libtpu: 0.0.40
codegen_flags: <defaults>
</compile_context>

<pallas_src>
import numpy as np

import jax
import jax.numpy as jnp
from jax import lax
from jax.experimental import pallas as pl
from jax.experimental.pallas import tpu as pltpu


def _round_up(x, m):
    return ((x + m - 1) // m) * m


def _fused_mlp2_kernel(sid_ref, x_ref, w1_ref, b1_ref, alpha_ref, w2_ref, b2_ref, o_ref):
    """One lane-dense column tile of Linear -> PReLU -> Linear in transposed layout.

    x_ref:  (F_pad, tm)  input rows on the lane axis
    w1_ref: (H, F_pad)   W1^T for the stream selected by sid
    b1_ref: (H, 1)
    w2_ref: (H, H)       W2^T
    b2_ref: (H, 1)
    alpha_ref: (2,) f32 in SMEM, PReLU slopes for {node, edge}
    o_ref:  (H, tm)      lane-dense output tile
    """
    sid = sid_ref[pl.program_id(0)]                       # 0 = node encoder, 1 = edge encoder
    xt = x_ref[...]                                       # (F_pad, tm)
    h = jnp.dot(w1_ref[...], xt,
                precision=lax.Precision.HIGHEST,
                preferred_element_type=jnp.float32)       # (H, tm)
    h = h + b1_ref[...]                                   # broadcast (H, 1) over lanes
    alpha = alpha_ref[sid]                                # scalar PReLU slope (num_parameters=1)
    h = jnp.where(h >= 0, h, alpha * h)                   # PReLU
    y = jnp.dot(w2_ref[...], h,
                precision=lax.Precision.HIGHEST,
                preferred_element_type=jnp.float32)       # (H, tm)
    y = y + b2_ref[...]
    o_ref[...] = y.astype(o_ref.dtype)


def encoder_forward(params, x, edge_attr, *, tm=512):
    """Fused node+edge encoder: one pallas_call over lane-dense column tiles.

    x:         (n_nodes, n_atom_feats) f32
    edge_attr: (n_edges, n_bond_feats) f32
    params: (nw1, nb1, n_alpha, nw2, nb2, ew1, eb1, e_alpha, ew2, eb2)
      with w1 stored as (F, H), w2 as (H, H), b as (H,), alpha as (1,)
    """
    nw1, nb1, n_alpha, nw2, nb2, ew1, eb1, e_alpha, ew2, eb2 = params
    n_nodes, f_node = x.shape
    n_edges, f_bond = edge_attr.shape
    n_hidden = nw1.shape[1]

    # Common, 8-aligned feature width (extra weight columns are zero -> exact no-op).
    f_pad = _round_up(max(f_node, f_bond), 8)

    # Lane tile: multiple of 128 (lane-dense stores), capped at 512 so the grid has an even,
    # >=2-step count for typical graph sizes (megacore split on v7x, pipeline depth on v5e/v6e).
    tm = max(128, min(tm, _round_up(max(n_nodes, n_edges), 128)))
    nn_tiles = pl.cdiv(n_nodes, tm)
    ne_tiles = pl.cdiv(n_edges, tm)
    nn_pad, ne_pad = nn_tiles * tm, ne_tiles * tm
    n_total = nn_pad + ne_pad
    total_tiles = nn_tiles + ne_tiles

    # --- layout plumbing (tiny arrays): transpose to (F, N), zero-pad, concat on lanes ---------
    x_t = jnp.pad(x.T, ((0, f_pad - f_node), (0, nn_pad - n_nodes)))
    e_t = jnp.pad(edge_attr.T, ((0, f_pad - f_bond), (0, ne_pad - n_edges)))
    xin = jnp.concatenate([x_t, e_t], axis=1)                       # (f_pad, n_total)

    w1t = jnp.stack([jnp.pad(nw1.T, ((0, 0), (0, f_pad - f_node))),
                     jnp.pad(ew1.T, ((0, 0), (0, f_pad - f_bond)))])  # (2, H, f_pad)
    b1t = jnp.stack([nb1[:, None], eb1[:, None]])                     # (2, H, 1)
    w2t = jnp.stack([nw2.T, ew2.T])                                   # (2, H, H)
    b2t = jnp.stack([nb2[:, None], eb2[:, None]])                     # (2, H, 1)
    alphas = jnp.concatenate([n_alpha.reshape(1), e_alpha.reshape(1)]).astype(jnp.float32)

    # Per-tile stream id (node tiles first, then edge tiles) -- scalar-prefetched into SMEM and
    # used by the index_maps to pick the right weight set.
    sid = jnp.asarray(np.concatenate([np.zeros(nn_tiles, np.int32),
                                      np.ones(ne_tiles, np.int32)]))

    out_t = pl.pallas_call(
        _fused_mlp2_kernel,
        out_shape=jax.ShapeDtypeStruct((n_hidden, n_total), x.dtype),
        grid_spec=pltpu.PrefetchScalarGridSpec(
            num_scalar_prefetch=1,
            grid=(total_tiles,),
            in_specs=[
                # streamed input column-tile (lane-dense)
                pl.BlockSpec((f_pad, tm), lambda i, s: (0, i)),
                # per-stream weights/biases, selected by the prefetched stream id
                pl.BlockSpec((None, n_hidden, f_pad), lambda i, s: (s[i], 0, 0)),   # W1^T
                pl.BlockSpec((None, n_hidden, 1), lambda i, s: (s[i], 0, 0)),       # b1
                pl.BlockSpec(memory_space=pltpu.MemorySpace.SMEM),                  # PReLU slopes
                pl.BlockSpec((None, n_hidden, n_hidden), lambda i, s: (s[i], 0, 0)),  # W2^T
                pl.BlockSpec((None, n_hidden, 1), lambda i, s: (s[i], 0, 0)),       # b2
            ],
            out_specs=pl.BlockSpec((n_hidden, tm), lambda i, s: (0, i)),
        ),
        compiler_params=pltpu.CompilerParams(
            dimension_semantics=("parallel",)),   # tiles independent -> megacore-splittable (v7x)
    )(sid, xin, w1t, b1t, alphas, w2t, b2t)

    x_out = out_t[:, :n_nodes].T
    e_out = out_t[:, nn_pad:nn_pad + n_edges].T
    return x_out, e_out


@jax.jit
def _encoder_forward(params, x, edge_attr):
    return encoder_forward(params, x, edge_attr)


def init_linear(key, fan_in, fan_out):
    """Deterministic init mimicking nn.Linear's uniform(-1/sqrt(fan_in), 1/sqrt(fan_in)).
    Weight returned pre-transposed as (fan_in, fan_out); bias as (fan_out,)."""
    kw, kb = jax.random.split(key)
    bound = 1.0 / jnp.sqrt(jnp.float32(fan_in))
    w = jax.random.uniform(kw, (fan_in, fan_out), jnp.float32, -bound, bound)
    b = jax.random.uniform(kb, (fan_out,), jnp.float32, -bound, bound)
    return w, b


class EncoderPallas:
    """Pallas equivalent of the PyTorch Encoder module."""

    def __init__(self, n_atom_feats, n_bond_feats, n_hidden, key):
        k1, k2, k3, k4 = jax.random.split(key, 4)
        # node_encoder params
        self.nw1, self.nb1 = init_linear(k1, n_atom_feats, n_hidden)
        self.nw2, self.nb2 = init_linear(k2, n_hidden, n_hidden)
        self.n_alpha = jnp.full((1,), 0.25, jnp.float32)   # PReLU default init
        # edge_encoder params
        self.ew1, self.eb1 = init_linear(k3, n_bond_feats, n_hidden)
        self.ew2, self.eb2 = init_linear(k4, n_hidden, n_hidden)
        self.e_alpha = jnp.full((1,), 0.25, jnp.float32)

        self._params = (self.nw1, self.nb1, self.n_alpha, self.nw2, self.nb2,
                        self.ew1, self.eb1, self.e_alpha, self.ew2, self.eb2)

    def __call__(self, x, edge_attr, batch):
        # `batch` is accepted for API parity but unused, matching the reference forward.
        return _encoder_forward(self._params, x, edge_attr)


def _reference(x, w1, b1, alpha, w2, b2):
    h = jnp.dot(x, w1, precision=lax.Precision.HIGHEST) + b1
    h = jnp.where(h >= 0, h, alpha.reshape(()) * h)
    return jnp.dot(h, w2, precision=lax.Precision.HIGHEST) + b2


if __name__ == "__main__":
    n_atom_feats, n_bond_feats, n_hidden = 16, 8, 32

    key = jax.random.PRNGKey(0)
    k_params, k_x, k_e, k_b = jax.random.split(key, 4)

    enc = EncoderPallas(n_atom_feats, n_bond_feats, n_hidden, k_params)

    # --- small test (one tile per stream -> 2 parallel grid steps) ---------------
    n_nodes, n_edges = 16, 24
    x = jax.random.normal(k_x, (n_nodes, n_atom_feats), jnp.float32)
    edge_attr = jax.random.normal(k_e, (n_edges, n_bond_feats), jnp.float32)
    batch = jax.random.randint(k_b, (n_nodes,), 0, 2)  # unused, API parity

    x_out, e_out = enc(x, edge_attr, batch)
    jax.block_until_ready((x_out, e_out))

    x_ref = _reference(x, enc.nw1, enc.nb1, enc.n_alpha, enc.nw2, enc.nb2)
    e_ref = _reference(edge_attr, enc.ew1, enc.eb1, enc.e_alpha, enc.ew2, enc.eb2)
    assert x_out.shape == (n_nodes, n_hidden)
    assert e_out.shape == (n_edges, n_hidden)
    assert jnp.allclose(x_out, x_ref, atol=1e-5, rtol=1e-5)
    assert jnp.allclose(e_out, e_ref, atol=1e-5, rtol=1e-5)

    # --- larger test: multi-step grid (6 node tiles + 10 edge tiles at tm=512) ---
    n_nodes_l, n_edges_l = 3000, 5000
    x_l = jax.random.normal(k_x, (n_nodes_l, n_atom_feats), jnp.float32)
    e_l = jax.random.normal(k_e, (n_edges_l, n_bond_feats), jnp.float32)
    batch_l = jax.random.randint(k_b, (n_nodes_l,), 0, 2)

    x_out_l, e_out_l = enc(x_l, e_l, batch_l)
    jax.block_until_ready((x_out_l, e_out_l))

    x_ref_l = _reference(x_l, enc.nw1, enc.nb1, enc.n_alpha, enc.nw2, enc.nb2)
    e_ref_l = _reference(e_l, enc.ew1, enc.eb1, enc.e_alpha, enc.ew2, enc.eb2)
    assert x_out_l.shape == (n_nodes_l, n_hidden)
    assert e_out_l.shape == (n_edges_l, n_hidden)
    assert jnp.allclose(x_out_l, x_ref_l, atol=1e-4, rtol=1e-4)
    assert jnp.allclose(e_out_l, e_ref_l, atol=1e-4, rtol=1e-4)

    print("KERNEL_OK")
</pallas_src>

<mosaic_0001>
module attributes {stable_mosaic.version = 11 : i64} {
  func.func @_fused_mlp2_kernel(%arg0: i32, %arg1: memref<2xi32, #tpu.memory_space<smem>>, %arg2: memref<16x128xf32, #tpu.memory_space<vmem>>, %arg3: memref<1x32x16xf32, #tpu.memory_space<vmem>>, %arg4: memref<1x32x1xf32, #tpu.memory_space<vmem>>, %arg5: memref<2xf32, #tpu.memory_space<smem>>, %arg6: memref<1x32x32xf32, #tpu.memory_space<vmem>>, %arg7: memref<1x32x1xf32, #tpu.memory_space<vmem>>, %arg8: memref<32x128xf32, #tpu.memory_space<vmem>>) attributes {dimension_semantics = [#tpu.dimension_semantics<parallel>], iteration_bounds = array<i64: 2>, scalar_prefetch = 1 : i64, scratch_operands = 0 : i64, tpu.core_type = #tpu.core_type<tc>, window_params = [{transform_indices = @transform_0, window_bounds = array<i64: 16, 128>}, {transform_indices = @transform_1, window_bounds = array<i64: 1, 32, 16>}, {transform_indices = @transform_2, window_bounds = array<i64: 1, 32, 1>}, {transform_indices = @transform_3, window_bounds = array<i64: 2>}, {transform_indices = @transform_4, window_bounds = array<i64: 1, 32, 32>}, {transform_indices = @transform_5, window_bounds = array<i64: 1, 32, 1>}, {transform_indices = @transform_6, window_bounds = array<i64: 32, 128>}]} {
    %0 = arith.index_cast %arg0 : i32 to index
    %1 = memref.load %arg1[%0] : memref<2xi32, #tpu.memory_space<smem>>
    %c0 = arith.constant 0 : index
    %c0_0 = arith.constant 0 : index
    %2 = vector.load %arg2[%c0, %c0_0] : memref<16x128xf32, #tpu.memory_space<vmem>>, vector<16x128xf32>
    %c0_1 = arith.constant 0 : index
    %c0_2 = arith.constant 0 : index
    %c0_3 = arith.constant 0 : index
    %3 = vector.load %arg3[%c0_1, %c0_2, %c0_3] : memref<1x32x16xf32, #tpu.memory_space<vmem>>, vector<1x32x16xf32>
    %4 = vector.shape_cast %3 : vector<1x32x16xf32> to vector<32x16xf32>
    %cst = arith.constant dense<0.000000e+00> : vector<32x128xf32>
    %5 = tpu.matmul %4, %2, %cst {dimension_numbers = #tpu.dot_dimension_numbers<[1], [0], [0], [1], [0, 0, 1, 1], [], []>, precision = #tpu.contract_precision<fp32>} : vector<32x16xf32>, vector<16x128xf32>, vector<32x128xf32> -> vector<32x128xf32>
    %c0_4 = arith.constant 0 : index
    %c0_5 = arith.constant 0 : index
    %c0_6 = arith.constant 0 : index
    %6 = vector.load %arg4[%c0_4, %c0_5, %c0_6] : memref<1x32x1xf32, #tpu.memory_space<vmem>>, vector<1x32x1xf32>
    %7 = vector.shape_cast %6 : vector<1x32x1xf32> to vector<32x1xf32>
    %8 = vector.broadcast %7 : vector<32x1xf32> to vector<32x128xf32>
    %9 = arith.addf %5, %8 : vector<32x128xf32>
    %10 = arith.index_cast %1 : i32 to index
    %11 = memref.load %arg5[%10] : memref<2xf32, #tpu.memory_space<smem>>
    %cst_7 = arith.constant 0.000000e+00 : f32
    %12 = vector.broadcast %cst_7 : f32 to vector<32x128xf32>
    %13 = arith.cmpf oge, %9, %12 : vector<32x128xf32>
    %14 = vector.broadcast %11 : f32 to vector<32x128xf32>
    %15 = arith.mulf %14, %9 : vector<32x128xf32>
    %16 = arith.select %13, %9, %15 : vector<32x128xi1>, vector<32x128xf32>
    %c0_8 = arith.constant 0 : index
    %c0_9 = arith.constant 0 : index
    %c0_10 = arith.constant 0 : index
    %17 = vector.load %arg6[%c0_8, %c0_9, %c0_10] : memref<1x32x32xf32, #tpu.memory_space<vmem>>, vector<1x32x32xf32>
    %18 = vector.shape_cast %17 : vector<1x32x32xf32> to vector<32x32xf32>
    %cst_11 = arith.constant dense<0.000000e+00> : vector<32x128xf32>
    %19 = tpu.matmul %18, %16, %cst_11 {dimension_numbers = #tpu.dot_dimension_numbers<[1], [0], [0], [1], [0, 0, 1, 1], [], []>, precision = #tpu.contract_precision<fp32>} : vector<32x32xf32>, vector<32x128xf32>, vector<32x128xf32> -> vector<32x128xf32>
    %c0_12 = arith.constant 0 : index
    %c0_13 = arith.constant 0 : index
    %c0_14 = arith.constant 0 : index
    %20 = vector.load %arg7[%c0_12, %c0_13, %c0_14] : memref<1x32x1xf32, #tpu.memory_space<vmem>>, vector<1x32x1xf32>
    %21 = vector.shape_cast %20 : vector<1x32x1xf32> to vector<32x1xf32>
    %22 = vector.broadcast %21 : vector<32x1xf32> to vector<32x128xf32>
    %23 = arith.addf %19, %22 : vector<32x128xf32>
    %c0_15 = arith.constant 0 : index
    %c0_16 = arith.constant 0 : index
    %24 = vector.load %arg8[%c0_15, %c0_16] : memref<32x128xf32, #tpu.memory_space<vmem>>, vector<32x128xf32>
    tpu.vector_store %arg8[%c0_15, %c0_16], %23 {strides = array<i32>} : memref<32x128xf32, #tpu.memory_space<vmem>>, vector<32x128xf32>,
    return
  }
  func.func @transform_0(%arg0: i32, %arg1: memref<2xi32, #tpu.memory_space<smem>>) -> (i32, i32) {
    %c0_i32 = arith.constant 0 : i32
    %c0_i32_0 = arith.constant 0 : i32
    return %c0_i32, %arg0 : i32, i32
  }
  func.func @transform_1(%arg0: i32, %arg1: memref<2xi32, #tpu.memory_space<smem>>) -> (i32, i32, i32) {
    %0 = arith.index_cast %arg0 : i32 to index
    %1 = memref.load %arg1[%0] : memref<2xi32, #tpu.memory_space<smem>>
    %c0_i32 = arith.constant 0 : i32
    %c0_i32_0 = arith.constant 0 : i32
    %c0_i32_1 = arith.constant 0 : i32
    return %1, %c0_i32, %c0_i32_0 : i32, i32, i32
  }
  func.func @transform_2(%arg0: i32, %arg1: memref<2xi32, #tpu.memory_space<smem>>) -> (i32, i32, i32) {
    %0 = arith.index_cast %arg0 : i32 to index
    %1 = memref.load %arg1[%0] : memref<2xi32, #tpu.memory_space<smem>>
    %c0_i32 = arith.constant 0 : i32
    %c0_i32_0 = arith.constant 0 : i32
    %c0_i32_1 = arith.constant 0 : i32
    return %1, %c0_i32, %c0_i32_0 : i32, i32, i32
  }
  func.func @transform_3(%arg0: i32, %arg1: memref<2xi32, #tpu.memory_space<smem>>) -> i32 {
    %c0_i32 = arith.constant 0 : i32
    %c0_i32_0 = arith.constant 0 : i32
    return %c0_i32 : i32
  }
  func.func @transform_4(%arg0: i32, %arg1: memref<2xi32, #tpu.memory_space<smem>>) -> (i32, i32, i32) {
    %0 = arith.index_cast %arg0 : i32 to index
    %1 = memref.load %arg1[%0] : memref<2xi32, #tpu.memory_space<smem>>
    %c0_i32 = arith.constant 0 : i32
    %c0_i32_0 = arith.constant 0 : i32
    %c0_i32_1 = arith.constant 0 : i32
    return %1, %c0_i32, %c0_i32_0 : i32, i32, i32
  }
  func.func @transform_5(%arg0: i32, %arg1: memref<2xi32, #tpu.memory_space<smem>>) -> (i32, i32, i32) {
    %0 = arith.index_cast %arg0 : i32 to index
    %1 = memref.load %arg1[%0] : memref<2xi32, #tpu.memory_space<smem>>
    %c0_i32 = arith.constant 0 : i32
    %c0_i32_0 = arith.constant 0 : i32
    %c0_i32_1 = arith.constant 0 : i32
    return %1, %c0_i32, %c0_i32_0 : i32, i32, i32
  }
  func.func @transform_6(%arg0: i32, %arg1: memref<2xi32, #tpu.memory_space<smem>>) -> (i32, i32) {
    %c0_i32 = arith.constant 0 : i32
    %c0_i32_0 = arith.constant 0 : i32
    return %c0_i32, %arg0 : i32, i32
  }
}

</mosaic_0001>

<llo_original>
// kernel: _encoder_forward.1
$region0: #{_encoder_forward.1}
  #allocation0 [shape = 'u32[]', space=smem, size = 0x4, offset = 0x4, fixed_abs, tag = 'smem constant byte address 0x4 - core index']
  #allocation1 [shape = 'u32[144,128]{1,0:T(1,128)}', space=vmem, size = 0x12000, scoped, tag = 'internal scratch']
  #allocation2 [shape = 's32[1]{0}', space=sflag, size = 0x4, scoped, tag = 'scoped memory for _encoder_forward.1']
  #allocation3 [shape = 'u8[512]{0}', space=smem, size = 0x200, scoped, tag = 'prefetched SMEM operand 0']
  %s0 = inlined_call_operand.vmem [shape: s32[2], index: 0, kind: input, shape index: {}]
  %s1 = inlined_call_operand.vmem [shape: f32[16,256], index: 1, kind: input, shape index: {}]
  %s2 = inlined_call_operand.vmem [shape: f32[2,32,16], index: 2, kind: input, shape index: {}]
  %s3 = inlined_call_operand.vmem [shape: f32[2,32,1], index: 3, kind: input, shape index: {}]
  %s4 = inlined_call_operand.vmem [shape: f32[2], index: 4, kind: input, shape index: {}]
  %s5 = inlined_call_operand.vmem [shape: f32[2,32,32], index: 5, kind: input, shape index: {}]
  %s6 = inlined_call_operand.vmem [shape: f32[2,32,1], index: 6, kind: input, shape index: {}]
  %s7 = inlined_call_operand.vmem [shape: f32[32,256], index: 7, kind: output, shape index: {}]
  %s8 = sld [smem:[#allocation0]]
  $region133: #{_encoder_forward.1} parent=0
    _
  %s10 = ssub.s32 1, %s8
  %s11 = scalar_select 0, %s10, %s8
  %s12 = sshll.u32 %s0, 4
  %s13 = int_to_ptr.vmem [resolvable:$true] %s12
  %15 = dma.vmem_to_smem %s13, 16, [#allocation3], [#allocation2]
  %16 = dma.done [#allocation2], 16
  %17 = sfence
  $region1: #{_encoder_forward.1} parent=0
    #allocation4 [shape = 'u8[16384]{0}', space=vmem, size = 0x4000, scoped, tag = 'input window, operand 1']
    #allocation5 [shape = 'u8[512]{0}', space=smem, size = 0x200, scoped, tag = 'input window, operand 4, single buffered']
    #allocation6 [shape = 's32[2]{0}', space=sflag, size = 0x8, scoped, tag = 'scoped memory for _encoder_forward.1']
    #allocation7 [shape = 'u8[32768]{0}', space=vmem, size = 0x8000, scoped, tag = 'output window, operand 0']
    %18 = vsyncpa [#allocation6], 0
    loop: start=0, step=1, limit=4
    $region2: #{_encoder_forward.1} parent=1 // loop_pre_header
      _
    $region3: #{_encoder_forward.1} parent=1 // loop_header
      %s20 = sphi 0, %s24
      %p21 = scmp.ge.s32.totalorder %s20, 4
      %s30 = sphi 0, %s32
      %s33 = sphi 0, %s30
      %s34 = sphi 0, %s33
      %s50 = sphi 0, %s34
      %s58 = sphi 0, %s60
      %s61 = sphi 0, %s58
      %s62 = sphi 0, %s61
      %s78 = sphi 0, %s62
      %s86 = sphi 0, %s88
      %s89 = sphi 0, %s86
      %s90 = sphi 0, %s89
      %s106 = sphi 0, %s90
      %s110 = sphi 0, %s110
      %s112 = sphi 0, %s110
      %s113 = sphi 0, %s112
      %s127 = sphi 0, %s113
      %s135 = sphi 0, %s137
      %s138 = sphi 0, %s135
      %s139 = sphi 0, %s138
      %s155 = sphi 0, %s139
      %s163 = sphi 0, %s165
      %s166 = sphi 0, %s163
      %s167 = sphi 0, %s166
      %s183 = sphi 0, %s167
      %s189 = sphi 0, %s191
      %s192 = sphi 0, %s189
      %s193 = sphi 0, %s192
      %s209 = sphi 0, %s193
    $region4: #{_encoder_forward.1} parent=1 // loop_header_branch
      %23 = sbr.rel (%p21) target = $region8
    $region5: #{_encoder_forward.1} parent=1 // loop_body
      %s25 = ssub.s32 %s20, 1
      %s26 = ssub.s32 %s20, 2
      %s27 = sadd.s32 %s20, 1
      %s28 = ssub.s32 %s20, %s27
      %p29 = scmp.eq.s32.totalorder %s28, 0
      %s31 = sadd.s32 %s30, 1
      %s32 = scalar_select %p29, %s30, %s31
      %p35 = pneg %p29
      %p36 = scmp.eq.s32.totalorder %s20, 1
      %p37 = por %p35, %p36
      %p38 = scmp.ne.s32.totalorder %s30, %s33
      %p39 = scmp.eq.s32.totalorder %s20, 0
      %p40 = por %p38, %p39
      %p41 = scmp.ne.s32.totalorder %s30, %s33
      %p42 = scmp.eq.s32.totalorder %s25, 1
      %p43 = por %p41, %p42
      %p44 = scmp.ne.s32.totalorder %s33, %s34
      %p45 = scmp.eq.s32.totalorder %s25, 0
      %p46 = por %p44, %p45
      %p47 = scmp.ne.s32.totalorder %s33, %s34
      %p48 = scmp.eq.s32.totalorder %s26, 1
      %p49 = por %p47, %p48
      %p51 = scmp.ne.s32.totalorder %s34, %s50
      %p52 = scmp.eq.s32.totalorder %s26, 0
      %p53 = por %p51, %p52
      %s54 = sld [smem:[#allocation3 + %s20]]
      %s55 = sld [smem:[#allocation3 + %s27]]
      %s56 = ssub.s32 %s54, %s55
      %p57 = scmp.eq.s32.totalorder %s56, 0
      %s59 = sadd.s32 %s58, 1
      %s60 = scalar_select %p57, %s58, %s59
      %p63 = pneg %p57
      %p64 = scmp.eq.s32.totalorder %s20, 1
      %p65 = por %p63, %p64
      %p66 = scmp.ne.s32.totalorder %s58, %s61
      %p67 = scmp.eq.s32.totalorder %s20, 0
      %p68 = por %p66, %p67
      %p69 = scmp.ne.s32.totalorder %s58, %s61
      %p70 = scmp.eq.s32.totalorder %s25, 1
      %p71 = por %p69, %p70
      %p72 = scmp.ne.s32.totalorder %s61, %s62
      %p73 = scmp.eq.s32.totalorder %s25, 0
      %p74 = por %p72, %p73
      %p75 = scmp.ne.s32.totalorder %s61, %s62
      %p76 = scmp.eq.s32.totalorder %s26, 1
      %p77 = por %p75, %p76
      %p79 = scmp.ne.s32.totalorder %s62, %s78
      %p80 = scmp.eq.s32.totalorder %s26, 0
      %p81 = por %p79, %p80
      %s82 = sld [smem:[#allocation3 + %s20]]
      %s83 = sld [smem:[#allocation3 + %s27]]
      %s84 = ssub.s32 %s82, %s83
      %p85 = scmp.eq.s32.totalorder %s84, 0
      %s87 = sadd.s32 %s86, 1
      %s88 = scalar_select %p85, %s86, %s87
      %p91 = pneg %p85
      %p92 = scmp.eq.s32.totalorder %s20, 1
      %p93 = por %p91, %p92
      %p94 = scmp.ne.s32.totalorder %s86, %s89
      %p95 = scmp.eq.s32.totalorder %s20, 0
      %p96 = por %p94, %p95
      %p97 = scmp.ne.s32.totalorder %s86, %s89
      %p98 = scmp.eq.s32.totalorder %s25, 1
      %p99 = por %p97, %p98
      %p100 = scmp.ne.s32.totalorder %s89, %s90
      %p101 = scmp.eq.s32.totalorder %s25, 0
      %p102 = por %p100, %p101
      %p103 = scmp.ne.s32.totalorder %s89, %s90
      %p104 = scmp.eq.s32.totalorder %s26, 1
      %p105 = por %p103, %p104
      %p107 = scmp.ne.s32.totalorder %s90, %s106
      %p108 = scmp.eq.s32.totalorder %s26, 0
      %p109 = por %p107, %p108
      %s111 = sadd.s32 %s110, 1
      %p114 = scmp.eq.s32.totalorder %s20, 1
      %p115 = scmp.ne.s32.totalorder %s110, %s112
      %p116 = scmp.eq.s32.totalorder %s20, 0
      %p117 = por %p115, %p116
      %p118 = scmp.ne.s32.totalorder %s110, %s112
      %p119 = scmp.eq.s32.totalorder %s25, 1
      %p120 = por %p118, %p119
      %p121 = scmp.ne.s32.totalorder %s112, %s113
      %p122 = scmp.eq.s32.totalorder %s25, 0
      %p123 = por %p121, %p122
      %p124 = scmp.ne.s32.totalorder %s112, %s113
      %p125 = scmp.eq.s32.totalorder %s26, 1
      %p126 = por %p124, %p125
      %p128 = scmp.ne.s32.totalorder %s113, %s127
      %p129 = scmp.eq.s32.totalorder %s26, 0
      %p130 = por %p128, %p129
      %s131 = sld [smem:[#allocation3 + %s20]]
      %s132 = sld [smem:[#allocation3 + %s27]]
      %s133 = ssub.s32 %s131, %s132
      %p134 = scmp.eq.s32.totalorder %s133, 0
      %s136 = sadd.s32 %s135, 1
      %s137 = scalar_select %p134, %s135, %s136
      %p140 = pneg %p134
      %p141 = scmp.eq.s32.totalorder %s20, 1
      %p142 = por %p140, %p141
      %p143 = scmp.ne.s32.totalorder %s135, %s138
      %p144 = scmp.eq.s32.totalorder %s20, 0
      %p145 = por %p143, %p144
      %p146 = scmp.ne.s32.totalorder %s135, %s138
      %p147 = scmp.eq.s32.totalorder %s25, 1
      %p148 = por %p146, %p147
      %p149 = scmp.ne.s32.totalorder %s138, %s139
      %p150 = scmp.eq.s32.totalorder %s25, 0
      %p151 = por %p149, %p150
      %p152 = scmp.ne.s32.totalorder %s138, %s139
      %p153 = scmp.eq.s32.totalorder %s26, 1
      %p154 = por %p152, %p153
      %p156 = scmp.ne.s32.totalorder %s139, %s155
      %p157 = scmp.eq.s32.totalorder %s26, 0
      %p158 = por %p156, %p157
      %s159 = sld [smem:[#allocation3 + %s20]]
      %s160 = sld [smem:[#allocation3 + %s27]]
      %s161 = ssub.s32 %s159, %s160
      %p162 = scmp.eq.s32.totalorder %s161, 0
      %s164 = sadd.s32 %s163, 1
      %s165 = scalar_select %p162, %s163, %s164
      %p168 = pneg %p162
      %p169 = scmp.eq.s32.totalorder %s20, 1
      %p170 = por %p168, %p169
      %p171 = scmp.ne.s32.totalorder %s163, %s166
      %p172 = scmp.eq.s32.totalorder %s20, 0
      %p173 = por %p171, %p172
      %p174 = scmp.ne.s32.totalorder %s163, %s166
      %p175 = scmp.eq.s32.totalorder %s25, 1
      %p176 = por %p174, %p175
      %p177 = scmp.ne.s32.totalorder %s166, %s167
      %p178 = scmp.eq.s32.totalorder %s25, 0
      %p179 = por %p177, %p178
      %p180 = scmp.ne.s32.totalorder %s166, %s167
      %p181 = scmp.eq.s32.totalorder %s26, 1
      %p182 = por %p180, %p181
      %p184 = scmp.ne.s32.totalorder %s167, %s183
      %p185 = scmp.eq.s32.totalorder %s26, 0
      %p186 = por %p184, %p185
      %s187 = ssub.s32 %s20, %s27
      %p188 = scmp.eq.s32.totalorder %s187, 0
      %s190 = sadd.s32 %s189, 1
      %s191 = scalar_select %p188, %s189, %s190
      %p194 = pneg %p188
      %p195 = scmp.eq.s32.totalorder %s20, 1
      %p196 = por %p194, %p195
      %p197 = scmp.ne.s32.totalorder %s189, %s192
      %p198 = scmp.eq.s32.totalorder %s20, 0
      %p199 = por %p197, %p198
      %p200 = scmp.ne.s32.totalorder %s189, %s192
      %p201 = scmp.eq.s32.totalorder %s25, 1
      %p202 = por %p200, %p201
      %p203 = scmp.ne.s32.totalorder %s192, %s193
      %p204 = scmp.eq.s32.totalorder %s25, 0
      %p205 = por %p203, %p204
      %p206 = scmp.ne.s32.totalorder %s192, %s193
      %p207 = scmp.eq.s32.totalorder %s26, 1
      %p208 = por %p206, %p207
      %p210 = scmp.ne.s32.totalorder %s193, %s209
      %p211 = scmp.eq.s32.totalorder %s26, 0
      %p212 = por %p210, %p211
      %p213 = scmp.le.s32.totalorder 1, %s20
      %p214 = scmp.lt.s32.totalorder %s20, 3
      %p215 = pnand %p213, %p214
      %p216 = pneg %p215
      // Predicated region
      $region9: #{_encoder_forward.1} parent=5 // pred_check
        _
      $region10: #{_encoder_forward.1} parent=5 // pred_check_branch
        %218 = sbr.rel (%p215) target = $region12
      $region11: #{_encoder_forward.1} parent=5 // pred_region
        %s219 = ssub.s32 %s20, 1
        // Predicated region
        $region13: #{_encoder_forward.1} parent=11 // pred_check
          %p220 = pneg %p123
        $region14: #{_encoder_forward.1} parent=11 // pred_check_branch
          %222 = sbr.rel (%p220) target = $region16
        $region15: #{_encoder_forward.1} parent=11 // pred_region
          %s224 = ssub.s32 16, 16
          %225 = vsyncadd [#allocation6], %s224
          %s227 = sshll.u32 %s4, 4
          %s228 = int_to_ptr.vmem [resolvable:$true] %s227
          %230 = dma.vmem_to_smem %s228, 16, [#allocation5], [#allocation6]
        $region16: #{_encoder_forward.1} parent=11 // pred_fallthru
          _
      $region12: #{_encoder_forward.1} parent=5 // pred_fallthru
        _
      %p231 = scmp.lt.s32.totalorder %s20, 2
      // Predicated region
      $region17: #{_encoder_forward.1} parent=5 // pred_check
        %p232 = pneg %p231
      $region18: #{_encoder_forward.1} parent=5 // pred_check_branch
        %234 = sbr.rel (%p232) target = $region20
      $region19: #{_encoder_forward.1} parent=5 // pred_region
        // Predicated region
        $region21: #{_encoder_forward.1} parent=19 // pred_check
          %p235 = pneg %p40
        $region22: #{_encoder_forward.1} parent=19 // pred_check_branch
          %237 = sbr.rel (%p235) target = $region24
        $region23: #{_encoder_forward.1} parent=19 // pred_region
          %s238 = sand.u32 %s30, 1
          %s239 = sand.u32 %s30, 1
          %s240 = smul.addr %s239, 16
          %s241 = scalar_lea.vmem [#allocation4], %s240
          %s242 = smul.addr %s20, 8
          %s243 = scalar_lea.vmem %s1, %s242
          // Predicated region
          $region25: #{_encoder_forward.1} parent=23 // pred_check
            _
          $region26: #{_encoder_forward.1} parent=23 // pred_check_branch
            %245 = sbr.rel (0) target = $region28
          $region27: #{_encoder_forward.1} parent=23 // pred_region
            // Predicated region
            $region29: #{_encoder_forward.1} parent=27 // pred_check
              _
            $region30: #{_encoder_forward.1} parent=27 // pred_check_branch
              %247 = sbr.rel (0) target = $region32
            $region31: #{_encoder_forward.1} parent=27 // pred_region
              // Predicated region
              $region44: #{_encoder_forward.1} parent=31 // pred_check
                _
              $region45: #{_encoder_forward.1} parent=31 // pred_check_branch
                %264 = sbr.rel (0) target = $region47
              $region46: #{_encoder_forward.1} parent=31 // pred_region
                loop: start=0, step=1, limit=1
                $region48: #{_encoder_forward.1} parent=46 // loop_pre_header
                  _
                $region49: #{_encoder_forward.1} parent=46 // loop_header
                  %s266 = sphi 0, %s270
                  %p267 = scmp.ge.s32.totalorder %s266, 1
                  %s271 = sphi %s243, %s243
                  %s272 = sphi %s241, %s241
                $region50: #{_encoder_forward.1} parent=46 // loop_header_branch
                  %269 = sbr.rel (%p267) target = $region54
                $region51: #{_encoder_forward.1} parent=46 // loop_body
                  %v273 = vld [vmem:[%s271] sm:$0xff]
                  %274 = vst [vmem:[%s272] sm:$0xff] %v273
                  %v275 = vld [vmem:[%s271 + $0x10] sm:$0xff]
                  %276 = vst [vmem:[%s272 + $0x8] sm:$0xff] %v275
                $region52: #{_encoder_forward.1} parent=46 // loop_footer
                  %s270 = sadd.s32 1, %s266
                $region53: #{_encoder_forward.1} parent=46 // loop_footer_branch
                  %265 = sbr.rel target = $region49
                $region54: #{_encoder_forward.1} parent=46 // loop_exit
                  _
              $region47: #{_encoder_forward.1} parent=31 // pred_fallthru
                _
              // Predicated region
              $region55: #{_encoder_forward.1} parent=31 // pred_check
                _
              $region56: #{_encoder_forward.1} parent=31 // pred_check_branch
                %278 = sbr.rel target = $region58
              $region57: #{_encoder_forward.1} parent=31 // pred_region
                _
              $region58: #{_encoder_forward.1} parent=31 // pred_fallthru
                _
            $region32: #{_encoder_forward.1} parent=27 // pred_fallthru
              _
            // Predicated region
            $region33: #{_encoder_forward.1} parent=27 // pred_check
              _
            $region34: #{_encoder_forward.1} parent=27 // pred_check_branch
              %249 = sbr.rel target = $region36
            $region35: #{_encoder_forward.1} parent=27 // pred_region
              loop: start=0, step=1, limit=1
              $region37: #{_encoder_forward.1} parent=35 // loop_pre_header
                _
              $region38: #{_encoder_forward.1} parent=35 // loop_header
                %s252 = sphi 0, %s256
                %p253 = scmp.ge.s32.totalorder %s252, 1
                %s257 = sphi %s243, %s243
                %s258 = sphi %s241, %s241
              $region39: #{_encoder_forward.1} parent=35 // loop_header_branch
                %255 = sbr.rel (%p253) target = $region43
              $region40: #{_encoder_forward.1} parent=35 // loop_body
                %v259 = vld [vmem:[%s257] sm:$0xff]
                %260 = vst [vmem:[%s258] sm:$0xff] %v259
                %v261 = vld [vmem:[%s257 + $0x10] sm:$0xff]
                %262 = vst [vmem:[%s258 + $0x8] sm:$0xff] %v261
              $region41: #{_encoder_forward.1} parent=35 // loop_footer
                %s256 = sadd.s32 1, %s252
              $region42: #{_encoder_forward.1} parent=35 // loop_footer_branch
                %251 = sbr.rel target = $region38
              $region43: #{_encoder_forward.1} parent=35 // loop_exit
                _
            $region36: #{_encoder_forward.1} parent=27 // pred_fallthru
              _
          $region28: #{_encoder_forward.1} parent=23 // pred_fallthru
            _
          %279 = vnop
        $region24: #{_encoder_forward.1} parent=19 // pred_fallthru
          _
        // Predicated region
        $region59: #{_encoder_forward.1} parent=19 // pred_check
          %p280 = pneg %p68
        $region60: #{_encoder_forward.1} parent=19 // pred_check_branch
          %282 = sbr.rel (%p280) target = $region62
        $region61: #{_encoder_forward.1} parent=19 // pred_region
          %s283 = sld [smem:[#allocation3 + %s20]]
          %p284 = scmp.lt.s32.totalorder %s283, 1
          %s285 = scalar_select %p284, %s283, 1
          %s286 = smul.addr %s285, 4
          %s287 = smul.addr %s286, 8
          %s288 = scalar_lea.vmem %s2, %s287
          %s289 = sld [smem:[#allocation3 + %s20]]
        $region62: #{_encoder_forward.1} parent=19 // pred_fallthru
          _
        // Predicated region
        $region63: #{_encoder_forward.1} parent=19 // pred_check
          %p290 = pneg %p96
        $region64: #{_encoder_forward.1} parent=19 // pred_check_branch
          %292 = sbr.rel (%p290) target = $region66
        $region65: #{_encoder_forward.1} parent=19 // pred_region
          %s293 = sld [smem:[#allocation3 + %s20]]
          %p294 = scmp.lt.s32.totalorder %s293, 1
          %s295 = scalar_select %p294, %s293, 1
          %s296 = smul.addr %s295, 4
          %s297 = smul.addr %s296, 8
          %s298 = scalar_lea.vmem %s3, %s297
          %s299 = sld [smem:[#allocation3 + %s20]]
        $region66: #{_encoder_forward.1} parent=19 // pred_fallthru
          _
        // Predicated region
        $region67: #{_encoder_forward.1} parent=19 // pred_check
          %p300 = pneg %p145
        $region68: #{_encoder_forward.1} parent=19 // pred_check_branch
          %302 = sbr.rel (%p300) target = $region70
        $region69: #{_encoder_forward.1} parent=19 // pred_region
          %s303 = sld [smem:[#allocation3 + %s20]]
          %p304 = scmp.lt.s32.totalorder %s303, 1
          %s305 = scalar_select %p304, %s303, 1
          %s306 = smul.addr %s305, 4
          %s307 = smul.addr %s306, 8
          %s308 = scalar_lea.vmem %s5, %s307
          %s309 = sld [smem:[#allocation3 + %s20]]
        $region70: #{_encoder_forward.1} parent=19 // pred_fallthru
          _
        // Predicated region
        $region71: #{_encoder_forward.1} parent=19 // pred_check
          %p310 = pneg %p173
        $region72: #{_encoder_forward.1} parent=19 // pred_check_branch
          %312 = sbr.rel (%p310) target = $region74
        $region73: #{_encoder_forward.1} parent=19 // pred_region
          %s313 = sld [smem:[#allocation3 + %s20]]
          %p314 = scmp.lt.s32.totalorder %s313, 1
          %s315 = scalar_select %p314, %s313, 1
          %s316 = smul.addr %s315, 4
          %s317 = smul.addr %s316, 8
          %s318 = scalar_lea.vmem %s6, %s317
          %s319 = sld [smem:[#allocation3 + %s20]]
        $region74: #{_encoder_forward.1} parent=19 // pred_fallthru
          _
      $region20: #{_encoder_forward.1} parent=5 // pred_fallthru
        _
      %p320 = scmp.le.s32.totalorder 1, %s20
      %p321 = scmp.lt.s32.totalorder %s20, 3
      %p322 = pnand %p320, %p321
      %p323 = pneg %p322
      // Predicated region
      $region75: #{_encoder_forward.1} parent=5 // pred_check
        _
      $region76: #{_encoder_forward.1} parent=5 // pred_check_branch
        %325 = sbr.rel (%p322) target = $region78
      $region77: #{_encoder_forward.1} parent=5 // pred_region
        %s326 = ssub.s32 %s20, 1
        %s327 = sand.u32 %s33, 1
        %s328 = sand.u32 %s33, 1
        %s329 = smul.addr %s328, 16
        %s330 = scalar_lea.vmem [#allocation4], %s329
        // Predicated region
        $region79: #{_encoder_forward.1} parent=77 // pred_check
          %p331 = pneg %p46
        $region80: #{_encoder_forward.1} parent=77 // pred_check_branch
          %333 = sbr.rel (%p331) target = $region82
        $region81: #{_encoder_forward.1} parent=77 // pred_region
          _
        $region82: #{_encoder_forward.1} parent=77 // pred_fallthru
          _
        // Predicated region
        $region83: #{_encoder_forward.1} parent=77 // pred_check
          %p334 = pneg %p123
        $region84: #{_encoder_forward.1} parent=77 // pred_check_branch
          %336 = sbr.rel (%p334) target = $region86
        $region85: #{_encoder_forward.1} parent=77 // pred_region
          %337 = dma.done [#allocation6], 16
        $region86: #{_encoder_forward.1} parent=77 // pred_fallthru
          _
        %338 = sfence
        %s339 = sand.u32 %s33, 1
        %s340 = sand.u32 %s33, 1
        %s341 = smul.addr %s340, 16
        %s342 = scalar_lea.vmem [#allocation4], %s341
        %p343 = pneg %p46
        %p344 = pneg %p43
        %s345 = sld [smem:[#allocation3 + %s25]]
        %p346 = scmp.lt.s32.totalorder %s345, 1
        %s347 = scalar_select %p346, %s345, 1
        %s348 = smul.addr %s347, 4
        %s349 = smul.addr %s348, 8
        %s350 = scalar_lea.vmem %s2, %s349
        %p351 = pneg %p74
        %p352 = pneg %p71
        %s353 = sld [smem:[#allocation3 + %s25]]
        %p354 = scmp.lt.s32.totalorder %s353, 1
        %s355 = scalar_select %p354, %s353, 1
        %s356 = smul.addr %s355, 4
        %s357 = smul.addr %s356, 8
        %s358 = scalar_lea.vmem %s3, %s357
        %p359 = pneg %p102
        %p360 = pneg %p99
        %p361 = pneg %p123
        %p362 = pneg %p120
        %s363 = sld [smem:[#allocation3 + %s25]]
        %p364 = scmp.lt.s32.totalorder %s363, 1
        %s365 = scalar_select %p364, %s363, 1
        %s366 = smul.addr %s365, 4
        %s367 = smul.addr %s366, 8
        %s368 = scalar_lea.vmem %s5, %s367
        %p369 = pneg %p151
        %p370 = pneg %p148
        %s371 = sld [smem:[#allocation3 + %s25]]
        %p372 = scmp.lt.s32.totalorder %s371, 1
        %s373 = scalar_select %p372, %s371, 1
        %s374 = smul.addr %s373, 4
        %s375 = smul.addr %s374, 8
        %s376 = scalar_lea.vmem %s6, %s375
        %p377 = pneg %p179
        %p378 = pneg %p176
        %p379 = pneg %p205
        %p380 = pneg %p202
        %s381 = sand.u32 %s192, 1
        %s382 = sand.u32 %s192, 1
        %s383 = smul.addr %s382, 32
        %s384 = scalar_lea.vmem [#allocation7], %s383
        %s385 = sld [smem:[#allocation3 + %s25]]
        %p386 = scmp.lt.s32.totalorder %s385, 1
        %s387 = scalar_select %p386, %s385, 1
        %s388 = smul.addr %s387, 4
        %s389 = smul.addr %s388, 8
        %s390 = scalar_lea.vmem %s2, %s389
        %s391 = sld [smem:[#allocation3 + %s25]]
        %s392 = sld [smem:[#allocation3 + %s25]]
        %p393 = scmp.lt.s32.totalorder %s392, 1
        %s394 = scalar_select %p393, %s392, 1
        %s395 = smul.addr %s394, 4
        %s396 = smul.addr %s395, 8
        %s397 = scalar_lea.vmem %s3, %s396
        %s398 = sld [smem:[#allocation3 + %s25]]
        %s399 = sld [smem:[#allocation3 + %s25]]
        %p400 = scmp.lt.s32.totalorder %s399, 1
        %s401 = scalar_select %p400, %s399, 1
        %s402 = smul.addr %s401, 4
        %s403 = smul.addr %s402, 8
        %s404 = scalar_lea.vmem %s5, %s403
        %s405 = sld [smem:[#allocation3 + %s25]]
        %s406 = sld [smem:[#allocation3 + %s25]]
        %p407 = scmp.lt.s32.totalorder %s406, 1
        %s408 = scalar_select %p407, %s406, 1
        %s409 = smul.addr %s408, 4
        %s410 = smul.addr %s409, 8
        %s411 = scalar_lea.vmem %s6, %s410
        %s412 = sld [smem:[#allocation3 + %s25]]
        %s413 = sld [smem:[#allocation3 + %s25]]
        %v414 = vld [vmem:[%s330] sm:$0xff]
        %v415 = vld [vmem:[%s330 + $0x8] sm:$0xff]
        %v416 = vld [vmem:[%s390] sm:$0xff]
        %v417 = vld [vmem:[%s390 + $0x8] sm:$0xff]
        %v418 = vld [vmem:[%s390 + $0x10] sm:$0xff]
        %v419 = vld [vmem:[%s390 + $0x18] sm:$0xff]
        %v420 = vld [vmem:[%s397] sm:$0xff]
        %v421 = vld [vmem:[%s397 + $0x8] sm:$0xff]
        %v422 = vld [vmem:[%s397 + $0x10] sm:$0xff]
        %v423 = vld [vmem:[%s397 + $0x18] sm:$0xff]
        %425 = vset.pattern.permute.xlu0 0
        %426 = vperm.xlu0 %425, %v420
        %v427 = vpop.permute.xlu0 %426
        %430 = vset.pattern.permute.xlu0 0
        %431 = vperm.xlu0 %430, %v421
        %v432 = vpop.permute.xlu0 %431
        %435 = vset.pattern.permute.xlu0 0
        %436 = vperm.xlu0 %435, %v422
        %v437 = vpop.permute.xlu0 %436
        %440 = vset.pattern.permute.xlu0 0
        %441 = vperm.xlu0 %440, %v423
        %v442 = vpop.permute.xlu0 %441
        %vm444 = vcmask 130048
        %v446 = vsel %vm444, %v416, 0
        %v449 = vsel %vm444, %v417, 0
        %v452 = vsel %vm444, %v418, 0
        %v455 = vsel %vm444, %v419, 0
        %457 = vmatprep.subr.mxu0 0.0
        %v458 = vand.u32 %v414, 4294901760
        %459 = vmatpush1.msra.mxu0 %v458
        %460 = vmatprep.subr.mxu0 0.0
        %v461 = vand.u32 %v415, 4294901760
        %462 = vmatpush1.msra.mxu0 %v461
        %463 = vmatprep.subr.mxu0 0.0
        %464 = vmatpush1.msra.mxu0 0.0
        %465 = vmatprep.subr.mxu0 0.0
        %466 = vmatpush1.msra.mxu0 0.0
        %467 = vmatprep.subr.mxu0 0.0
        %468 = vmatpush1.msra.mxu0 0.0
        %469 = vmatprep.subr.mxu0 0.0
        %470 = vmatpush1.msra.mxu0 0.0
        %471 = vmatprep.subr.mxu0 0.0
        %472 = vmatpush1.msra.mxu0 0.0
        %473 = vmatprep.subr.mxu0 0.0
        %474 = vmatpush1.msra.mxu0 0.0
        %475 = vmatprep.subr.mxu0 0.0
        %476 = vmatpush1.msra.mxu0 0.0
        %477 = vmatprep.subr.mxu0 0.0
        %478 = vmatpush1.msra.mxu0 0.0
        %479 = vmatprep.subr.mxu0 0.0
        %480 = vmatpush1.msra.mxu0 0.0
        %481 = vmatprep.subr.mxu0 0.0
        %482 = vmatpush1.msra.mxu0 0.0
        %483 = vmatprep.subr.mxu0 0.0
        %484 = vmatpush1.msra.mxu0 0.0
        %485 = vmatprep.subr.mxu0 0.0
        %486 = vmatpush1.msra.mxu0 0.0
        %487 = vmatprep.subr.mxu0 0.0
        %488 = vmatpush1.msra.mxu0 0.0
        %489 = vmatprep.subr.mxu0 0.0
        %490 = vmatpush1.msra.mxu0 0.0
        %491 = vmatprep.subr.mxu0 0.0
        %492 = vmatpush1.msra.mxu0 0.0
        %493 = vmatprep.subr.mxu0 0.0
        %494 = vmatpush1.msra.mxu0 0.0
        %495 = vmatprep.subr.mxu0 0.0
        %496 = vmatpush1.msra.mxu0 0.0
        %497 = vmatprep.subr.mxu0 0.0
        %498 = vmatpush1.msra.mxu0 0.0
        %499 = vmatprep.subr.mxu0 0.0
        %500 = vmatpush1.msra.mxu0 0.0
        %501 = vmatprep.subr.mxu0 0.0
        %502 = vmatpush1.msra.mxu0 0.0
        %503 = vmatprep.subr.mxu0 0.0
        %504 = vmatpush1.msra.mxu0 0.0
        %505 = vmatprep.subr.mxu0 0.0
        %506 = vmatpush1.msra.mxu0 0.0
        %507 = vmatprep.subr.mxu0 0.0
        %508 = vmatpush1.msra.mxu0 0.0
        %509 = vmatprep.subr.mxu0 0.0
        %510 = vmatpush1.msra.mxu0 0.0
        %511 = vmatprep.subr.mxu0 0.0
        %512 = vmatpush1.msra.mxu0 0.0
        %513 = vmatprep.subr.mxu0 0.0
        %514 = vmatpush1.msra.mxu0 0.0
        %515 = vmatprep.subr.mxu0 0.0
        %516 = vmatpush1.msra.mxu0 0.0
        %517 = vmatprep.subr.mxu0 0.0
        %518 = vmatpush1.msra.mxu0 0.0
        %519 = vmatprep.subr.mxu0 0.0
        %520 = vmatpush1.msra.mxu0 0.0
        %521 = vmatprep.subr.mxu0 0.0
        %522 = vmatpush1.msra.mxu0 0.0
        %523 = vmatprep.mubr.f32.mxu0 0.0
        %v524 = vand.u32 %v446, 4294901760
        %v525 = vsub.f32 %v446, %v524
        %v526 = vand.u32 %v525, 4294901760
        %v527 = vsub.f32 %v525, %v526
        %v528 = vand.u32 %v527, 4294901760
        %529 = vmatmul.mubr.f32.gmra.mrb[0].mxu0 %v528
        %v530 = vpop.f32.mrb[0].mxu0
        %v531 = vadd.f32 %v427, %v530
        %v532 = vpop.f32.mrb[0].mxu0
        %533 = vmatprep.mubr.f32.mxu0 0.0
        %v534 = vand.u32 %v449, 4294901760
        %v535 = vsub.f32 %v449, %v534
        %v536 = vand.u32 %v535, 4294901760
        %v537 = vsub.f32 %v535, %v536
        %v538 = vand.u32 %v537, 4294901760
        %539 = vmatmul.mubr.f32.gmra.mrb[0].mxu0 %v538
        %v540 = vpop.f32.mrb[0].mxu0
        %v541 = vadd.f32 %v432, %v540
        %v542 = vpop.f32.mrb[0].mxu0
        %543 = vmatprep.mubr.f32.mxu0 0.0
        %v544 = vand.u32 %v452, 4294901760
        %v545 = vsub.f32 %v452, %v544
        %v546 = vand.u32 %v545, 4294901760
        %v547 = vsub.f32 %v545, %v546
        %v548 = vand.u32 %v547, 4294901760
        %549 = vmatmul.mubr.f32.gmra.mrb[0].mxu0 %v548
        %v550 = vpop.f32.mrb[0].mxu0
        %v551 = vadd.f32 %v437, %v550
        %v552 = vpop.f32.mrb[0].mxu0
        %553 = vmatprep.mubr.f32.mxu0 0.0
        %v554 = vand.u32 %v455, 4294901760
        %v555 = vsub.f32 %v455, %v554
        %v556 = vand.u32 %v555, 4294901760
        %v557 = vsub.f32 %v555, %v556
        %v558 = vand.u32 %v557, 4294901760
        %559 = vmatmul.mubr.f32.gmra.mrb[0].mxu0 %v558
        %v560 = vpop.f32.mrb[0].mxu0
        %v561 = vadd.f32 %v442, %v560
        %v562 = vpop.f32.mrb[0].mxu0
        %563 = vdwg.mxu0
        %564 = vmatprep.subr.mxu0 0.0
        %v565 = vand.u32 %v414, 4294901760
        %v566 = vsub.f32 %v414, %v565
        %v567 = vand.u32 %v566, 4294901760
        %v568 = vsub.f32 %v566, %v567
        %v569 = vand.u32 %v568, 4294901760
        %570 = vmatpush1.msra.mxu0 %v569
        %571 = vmatprep.subr.mxu0 0.0
        %v572 = vand.u32 %v415, 4294901760
        %v573 = vsub.f32 %v415, %v572
        %v574 = vand.u32 %v573, 4294901760
        %v575 = vsub.f32 %v573, %v574
        %v576 = vand.u32 %v575, 4294901760
        %577 = vmatpush1.msra.mxu0 %v576
        %578 = vmatprep.subr.mxu0 0.0
        %579 = vmatpush1.msra.mxu0 0.0
        %580 = vmatprep.subr.mxu0 0.0
        %581 = vmatpush1.msra.mxu0 0.0
        %582 = vmatprep.subr.mxu0 0.0
        %583 = vmatpush1.msra.mxu0 0.0
        %584 = vmatprep.subr.mxu0 0.0
        %585 = vmatpush1.msra.mxu0 0.0
        %586 = vmatprep.subr.mxu0 0.0
        %587 = vmatpush1.msra.mxu0 0.0
        %588 = vmatprep.subr.mxu0 0.0
        %589 = vmatpush1.msra.mxu0 0.0
        %590 = vmatprep.subr.mxu0 0.0
        %591 = vmatpush1.msra.mxu0 0.0
        %592 = vmatprep.subr.mxu0 0.0
        %593 = vmatpush1.msra.mxu0 0.0
        %594 = vmatprep.subr.mxu0 0.0
        %595 = vmatpush1.msra.mxu0 0.0
        %596 = vmatprep.subr.mxu0 0.0
        %597 = vmatpush1.msra.mxu0 0.0
        %598 = vmatprep.subr.mxu0 0.0
        %599 = vmatpush1.msra.mxu0 0.0
        %600 = vmatprep.subr.mxu0 0.0
        %601 = vmatpush1.msra.mxu0 0.0
        %602 = vmatprep.subr.mxu0 0.0
        %603 = vmatpush1.msra.mxu0 0.0
        %604 = vmatprep.subr.mxu0 0.0
        %605 = vmatpush1.msra.mxu0 0.0
        %606 = vmatprep.subr.mxu0 0.0
        %607 = vmatpush1.msra.mxu0 0.0
        %608 = vmatprep.subr.mxu0 0.0
        %609 = vmatpush1.msra.mxu0 0.0
        %610 = vmatprep.subr.mxu0 0.0
        %611 = vmatpush1.msra.mxu0 0.0
        %612 = vmatprep.subr.mxu0 0.0
        %613 = vmatpush1.msra.mxu0 0.0
        %614 = vmatprep.subr.mxu0 0.0
        %615 = vmatpush1.msra.mxu0 0.0
        %616 = vmatprep.subr.mxu0 0.0
        %617 = vmatpush1.msra.mxu0 0.0
        %618 = vmatprep.subr.mxu0 0.0
        %619 = vmatpush1.msra.mxu0 0.0
        %620 = vmatprep.subr.mxu0 0.0
        %621 = vmatpush1.msra.mxu0 0.0
        %622 = vmatprep.subr.mxu0 0.0
        %623 = vmatpush1.msra.mxu0 0.0
        %624 = vmatprep.subr.mxu0 0.0
        %625 = vmatpush1.msra.mxu0 0.0
        %626 = vmatprep.subr.mxu0 0.0
        %627 = vmatpush1.msra.mxu0 0.0
        %628 = vmatprep.subr.mxu0 0.0
        %629 = vmatpush1.msra.mxu0 0.0
        %630 = vmatprep.subr.mxu0 0.0
        %631 = vmatpush1.msra.mxu0 0.0
        %632 = vmatprep.subr.mxu0 0.0
        %633 = vmatpush1.msra.mxu0 0.0
        %634 = vmatprep.subr.mxu0 0.0
        %635 = vmatpush1.msra.mxu0 0.0
        %636 = vmatprep.subr.mxu0 0.0
        %637 = vmatpush1.msra.mxu0 0.0
        %638 = vmatprep.mubr.f32.mxu0 0.0
        %v639 = vand.u32 %v446, 4294901760
        %640 = vmatmul.mubr.f32.gmra.mrb[0].mxu0 %v639
        %v641 = vpop.f32.mrb[0].mxu0
        %v642 = vadd.f32 %v531, %v641
        %v643 = vpop.f32.mrb[0].mxu0
        %644 = vmatprep.mubr.f32.mxu0 0.0
        %v645 = vand.u32 %v449, 4294901760
        %646 = vmatmul.mubr.f32.gmra.mrb[0].mxu0 %v645
        %v647 = vpop.f32.mrb[0].mxu0
        %v648 = vadd.f32 %v541, %v647
        %v649 = vpop.f32.mrb[0].mxu0
        %650 = vmatprep.mubr.f32.mxu0 0.0
        %v651 = vand.u32 %v452, 4294901760
        %652 = vmatmul.mubr.f32.gmra.mrb[0].mxu0 %v651
        %v653 = vpop.f32.mrb[0].mxu0
        %v654 = vadd.f32 %v551, %v653
        %v655 = vpop.f32.mrb[0].mxu0
        %656 = vmatprep.mubr.f32.mxu0 0.0
        %v657 = vand.u32 %v455, 4294901760
        %658 = vmatmul.mubr.f32.gmra.mrb[0].mxu0 %v657
        %v659 = vpop.f32.mrb[0].mxu0
        %v660 = vadd.f32 %v561, %v659
        %v661 = vpop.f32.mrb[0].mxu0
        %662 = vdwg.mxu0
        %663 = vmatprep.subr.mxu0 0.0
        %v664 = vand.u32 %v414, 4294901760
        %v665 = vsub.f32 %v414, %v664
        %666 = vmatpush1.msra.mxu0 %v665
        %667 = vmatprep.subr.mxu0 0.0
        %v668 = vand.u32 %v415, 4294901760
        %v669 = vsub.f32 %v415, %v668
        %670 = vmatpush1.msra.mxu0 %v669
        %671 = vmatprep.subr.mxu0 0.0
        %672 = vmatpush1.msra.mxu0 0.0
        %673 = vmatprep.subr.mxu0 0.0
        %674 = vmatpush1.msra.mxu0 0.0
        %675 = vmatprep.subr.mxu0 0.0
        %676 = vmatpush1.msra.mxu0 0.0
        %677 = vmatprep.subr.mxu0 0.0
        %678 = vmatpush1.msra.mxu0 0.0
        %679 = vmatprep.subr.mxu0 0.0
        %680 = vmatpush1.msra.mxu0 0.0
        %681 = vmatprep.subr.mxu0 0.0
        %682 = vmatpush1.msra.mxu0 0.0
        %683 = vmatprep.subr.mxu0 0.0
        %684 = vmatpush1.msra.mxu0 0.0
        %685 = vmatprep.subr.mxu0 0.0
        %686 = vmatpush1.msra.mxu0 0.0
        %687 = vmatprep.subr.mxu0 0.0
        %688 = vmatpush1.msra.mxu0 0.0
        %689 = vmatprep.subr.mxu0 0.0
        %690 = vmatpush1.msra.mxu0 0.0
        %691 = vmatprep.subr.mxu0 0.0
        %692 = vmatpush1.msra.mxu0 0.0
        %693 = vmatprep.subr.mxu0 0.0
        %694 = vmatpush1.msra.mxu0 0.0
        %695 = vmatprep.subr.mxu0 0.0
        %696 = vmatpush1.msra.mxu0 0.0
        %697 = vmatprep.subr.mxu0 0.0
        %698 = vmatpush1.msra.mxu0 0.0
        %699 = vmatprep.subr.mxu0 0.0
        %700 = vmatpush1.msra.mxu0 0.0
        %701 = vmatprep.subr.mxu0 0.0
        %702 = vmatpush1.msra.mxu0 0.0
        %703 = vmatprep.subr.mxu0 0.0
        %704 = vmatpush1.msra.mxu0 0.0
        %705 = vmatprep.subr.mxu0 0.0
        %706 = vmatpush1.msra.mxu0 0.0
        %707 = vmatprep.subr.mxu0 0.0
        %708 = vmatpush1.msra.mxu0 0.0
        %709 = vmatprep.subr.mxu0 0.0
        %710 = vmatpush1.msra.mxu0 0.0
        %711 = vmatprep.subr.mxu0 0.0
        %712 = vmatpush1.msra.mxu0 0.0
        %713 = vmatprep.subr.mxu0 0.0
        %714 = vmatpush1.msra.mxu0 0.0
        %715 = vmatprep.subr.mxu0 0.0
        %716 = vmatpush1.msra.mxu0 0.0
        %717 = vmatprep.subr.mxu0 0.0
        %718 = vmatpush1.msra.mxu0 0.0
        %719 = vmatprep.subr.mxu0 0.0
        %720 = vmatpush1.msra.mxu0 0.0
        %721 = vmatprep.subr.mxu0 0.0
        %722 = vmatpush1.msra.mxu0 0.0
        %723 = vmatprep.subr.mxu0 0.0
        %724 = vmatpush1.msra.mxu0 0.0
        %725 = vmatprep.subr.mxu0 0.0
        %726 = vmatpush1.msra.mxu0 0.0
        %727 = vmatprep.subr.mxu0 0.0
        %728 = vmatpush1.msra.mxu0 0.0
        %729 = vmatprep.subr.mxu0 0.0
        %730 = vmatpush1.msra.mxu0 0.0
        %731 = vmatprep.mubr.f32.mxu0 0.0
        %v732 = vand.u32 %v446, 4294901760
        %v733 = vsub.f32 %v446, %v732
        %734 = vmatmul.mubr.f32.gmra.mrb[0].mxu0 %v733
        %v735 = vpop.f32.mrb[0].mxu0
        %v736 = vadd.f32 %v642, %v735
        %v737 = vpop.f32.mrb[0].mxu0
        %738 = vmatprep.mubr.f32.mxu0 0.0
        %v739 = vand.u32 %v449, 4294901760
        %v740 = vsub.f32 %v449, %v739
        %741 = vmatmul.mubr.f32.gmra.mrb[0].mxu0 %v740
        %v742 = vpop.f32.mrb[0].mxu0
        %v743 = vadd.f32 %v648, %v742
        %v744 = vpop.f32.mrb[0].mxu0
        %745 = vmatprep.mubr.f32.mxu0 0.0
        %v746 = vand.u32 %v452, 4294901760
        %v747 = vsub.f32 %v452, %v746
        %748 = vmatmul.mubr.f32.gmra.mrb[0].mxu0 %v747
        %v749 = vpop.f32.mrb[0].mxu0
        %v750 = vadd.f32 %v654, %v749
        %v751 = vpop.f32.mrb[0].mxu0
        %752 = vmatprep.mubr.f32.mxu0 0.0
        %v753 = vand.u32 %v455, 4294901760
        %v754 = vsub.f32 %v455, %v753
        %755 = vmatmul.mubr.f32.gmra.mrb[0].mxu0 %v754
        %v756 = vpop.f32.mrb[0].mxu0
        %v757 = vadd.f32 %v660, %v756
        %v758 = vpop.f32.mrb[0].mxu0
        %759 = vdwg.mxu0
        %760 = vmatprep.subr.mxu0 0.0
        %v761 = vand.u32 %v414, 4294901760
        %762 = vmatpush1.msra.mxu0 %v761
        %763 = vmatprep.subr.mxu0 0.0
        %v764 = vand.u32 %v415, 4294901760
        %765 = vmatpush1.msra.mxu0 %v764
        %766 = vmatprep.subr.mxu0 0.0
        %767 = vmatpush1.msra.mxu0 0.0
        %768 = vmatprep.subr.mxu0 0.0
        %769 = vmatpush1.msra.mxu0 0.0
        %770 = vmatprep.subr.mxu0 0.0
        %771 = vmatpush1.msra.mxu0 0.0
        %772 = vmatprep.subr.mxu0 0.0
        %773 = vmatpush1.msra.mxu0 0.0
        %774 = vmatprep.subr.mxu0 0.0
        %775 = vmatpush1.msra.mxu0 0.0
        %776 = vmatprep.subr.mxu0 0.0
        %777 = vmatpush1.msra.mxu0 0.0
        %778 = vmatprep.subr.mxu0 0.0
        %779 = vmatpush1.msra.mxu0 0.0
        %780 = vmatprep.subr.mxu0 0.0
        %781 = vmatpush1.msra.mxu0 0.0
        %782 = vmatprep.subr.mxu0 0.0
        %783 = vmatpush1.msra.mxu0 0.0
        %784 = vmatprep.subr.mxu0 0.0
        %785 = vmatpush1.msra.mxu0 0.0
        %786 = vmatprep.subr.mxu0 0.0
        %787 = vmatpush1.msra.mxu0 0.0
        %788 = vmatprep.subr.mxu0 0.0
        %789 = vmatpush1.msra.mxu0 0.0
        %790 = vmatprep.subr.mxu0 0.0
        %791 = vmatpush1.msra.mxu0 0.0
        %792 = vmatprep.subr.mxu0 0.0
        %793 = vmatpush1.msra.mxu0 0.0
        %794 = vmatprep.subr.mxu0 0.0
        %795 = vmatpush1.msra.mxu0 0.0
        %796 = vmatprep.subr.mxu0 0.0
        %797 = vmatpush1.msra.mxu0 0.0
        %798 = vmatprep.subr.mxu0 0.0
        %799 = vmatpush1.msra.mxu0 0.0
        %800 = vmatprep.subr.mxu0 0.0
        %801 = vmatpush1.msra.mxu0 0.0
        %802 = vmatprep.subr.mxu0 0.0
        %803 = vmatpush1.msra.mxu0 0.0
        %804 = vmatprep.subr.mxu0 0.0
        %805 = vmatpush1.msra.mxu0 0.0
        %806 = vmatprep.subr.mxu0 0.0
        %807 = vmatpush1.msra.mxu0 0.0
        %808 = vmatprep.subr.mxu0 0.0
        %809 = vmatpush1.msra.mxu0 0.0
        %810 = vmatprep.subr.mxu0 0.0
        %811 = vmatpush1.msra.mxu0 0.0
        %812 = vmatprep.subr.mxu0 0.0
        %813 = vmatpush1.msra.mxu0 0.0
        %814 = vmatprep.subr.mxu0 0.0
        %815 = vmatpush1.msra.mxu0 0.0
        %816 = vmatprep.subr.mxu0 0.0
        %817 = vmatpush1.msra.mxu0 0.0
        %818 = vmatprep.subr.mxu0 0.0
        %819 = vmatpush1.msra.mxu0 0.0
        %820 = vmatprep.subr.mxu0 0.0
        %821 = vmatpush1.msra.mxu0 0.0
        %822 = vmatprep.subr.mxu0 0.0
        %823 = vmatpush1.msra.mxu0 0.0
        %824 = vmatprep.subr.mxu0 0.0
        %825 = vmatpush1.msra.mxu0 0.0
        %826 = vmatprep.mubr.f32.mxu0 0.0
        %v827 = vand.u32 %v446, 4294901760
        %v828 = vsub.f32 %v446, %v827
        %v829 = vand.u32 %v828, 4294901760
        %830 = vmatmul.mubr.f32.gmra.mrb[0].mxu0 %v829
        %v831 = vpop.f32.mrb[0].mxu0
        %v832 = vadd.f32 %v736, %v831
        %v833 = vpop.f32.mrb[0].mxu0
        %834 = vmatprep.mubr.f32.mxu0 0.0
        %v835 = vand.u32 %v449, 4294901760
        %v836 = vsub.f32 %v449, %v835
        %v837 = vand.u32 %v836, 4294901760
        %838 = vmatmul.mubr.f32.gmra.mrb[0].mxu0 %v837
        %v839 = vpop.f32.mrb[0].mxu0
        %v840 = vadd.f32 %v743, %v839
        %v841 = vpop.f32.mrb[0].mxu0
        %842 = vmatprep.mubr.f32.mxu0 0.0
        %v843 = vand.u32 %v452, 4294901760
        %v844 = vsub.f32 %v452, %v843
        %v845 = vand.u32 %v844, 4294901760
        %846 = vmatmul.mubr.f32.gmra.mrb[0].mxu0 %v845
        %v847 = vpop.f32.mrb[0].mxu0
        %v848 = vadd.f32 %v750, %v847
        %v849 = vpop.f32.mrb[0].mxu0
        %850 = vmatprep.mubr.f32.mxu0 0.0
        %v851 = vand.u32 %v455, 4294901760
        %v852 = vsub.f32 %v455, %v851
        %v853 = vand.u32 %v852, 4294901760
        %854 = vmatmul.mubr.f32.gmra.mrb[0].mxu0 %v853
        %v855 = vpop.f32.mrb[0].mxu0
        %v856 = vadd.f32 %v757, %v855
        %v857 = vpop.f32.mrb[0].mxu0
        %858 = vdwg.mxu0
        %859 = vmatprep.subr.mxu0 0.0
        %v860 = vand.u32 %v414, 4294901760
        %v861 = vsub.f32 %v414, %v860
        %v862 = vand.u32 %v861, 4294901760
        %863 = vmatpush1.msra.mxu0 %v862
        %864 = vmatprep.subr.mxu0 0.0
        %v865 = vand.u32 %v415, 4294901760
        %v866 = vsub.f32 %v415, %v865
        %v867 = vand.u32 %v866, 4294901760
        %868 = vmatpush1.msra.mxu0 %v867
        %869 = vmatprep.subr.mxu0 0.0
        %870 = vmatpush1.msra.mxu0 0.0
        %871 = vmatprep.subr.mxu0 0.0
        %872 = vmatpush1.msra.mxu0 0.0
        %873 = vmatprep.subr.mxu0 0.0
        %874 = vmatpush1.msra.mxu0 0.0
        %875 = vmatprep.subr.mxu0 0.0
        %876 = vmatpush1.msra.mxu0 0.0
        %877 = vmatprep.subr.mxu0 0.0
        %878 = vmatpush1.msra.mxu0 0.0
        %879 = vmatprep.subr.mxu0 0.0
        %880 = vmatpush1.msra.mxu0 0.0
        %881 = vmatprep.subr.mxu0 0.0
        %882 = vmatpush1.msra.mxu0 0.0
        %883 = vmatprep.subr.mxu0 0.0
        %884 = vmatpush1.msra.mxu0 0.0
        %885 = vmatprep.subr.mxu0 0.0
        %886 = vmatpush1.msra.mxu0 0.0
        %887 = vmatprep.subr.mxu0 0.0
        %888 = vmatpush1.msra.mxu0 0.0
        %889 = vmatprep.subr.mxu0 0.0
        %890 = vmatpush1.msra.mxu0 0.0
        %891 = vmatprep.subr.mxu0 0.0
        %892 = vmatpush1.msra.mxu0 0.0
        %893 = vmatprep.subr.mxu0 0.0
        %894 = vmatpush1.msra.mxu0 0.0
        %895 = vmatprep.subr.mxu0 0.0
        %896 = vmatpush1.msra.mxu0 0.0
        %897 = vmatprep.subr.mxu0 0.0
        %898 = vmatpush1.msra.mxu0 0.0
        %899 = vmatprep.subr.mxu0 0.0
        %900 = vmatpush1.msra.mxu0 0.0
        %901 = vmatprep.subr.mxu0 0.0
        %902 = vmatpush1.msra.mxu0 0.0
        %903 = vmatprep.subr.mxu0 0.0
        %904 = vmatpush1.msra.mxu0 0.0
        %905 = vmatprep.subr.mxu0 0.0
        %906 = vmatpush1.msra.mxu0 0.0
        %907 = vmatprep.subr.mxu0 0.0
        %908 = vmatpush1.msra.mxu0 0.0
        %909 = vmatprep.subr.mxu0 0.0
        %910 = vmatpush1.msra.mxu0 0.0
        %911 = vmatprep.subr.mxu0 0.0
        %912 = vmatpush1.msra.mxu0 0.0
        %913 = vmatprep.subr.mxu0 0.0
        %914 = vmatpush1.msra.mxu0 0.0
        %915 = vmatprep.subr.mxu0 0.0
        %916 = vmatpush1.msra.mxu0 0.0
        %917 = vmatprep.subr.mxu0 0.0
        %918 = vmatpush1.msra.mxu0 0.0
        %919 = vmatprep.subr.mxu0 0.0
        %920 = vmatpush1.msra.mxu0 0.0
        %921 = vmatprep.subr.mxu0 0.0
        %922 = vmatpush1.msra.mxu0 0.0
        %923 = vmatprep.subr.mxu0 0.0
        %924 = vmatpush1.msra.mxu0 0.0
        %925 = vmatprep.subr.mxu0 0.0
        %926 = vmatpush1.msra.mxu0 0.0
        %927 = vmatprep.subr.mxu0 0.0
        %928 = vmatpush1.msra.mxu0 0.0
        %929 = vmatprep.mubr.f32.mxu0 0.0
        %v930 = vand.u32 %v446, 4294901760
        %931 = vmatmul.mubr.f32.gmra.mrb[0].mxu0 %v930
        %v932 = vpop.f32.mrb[0].mxu0
        %v933 = vadd.f32 %v832, %v932
        %v934 = vpop.f32.mrb[0].mxu0
        %935 = vmatprep.mubr.f32.mxu0 0.0
        %v936 = vand.u32 %v449, 4294901760
        %937 = vmatmul.mubr.f32.gmra.mrb[0].mxu0 %v936
        %v938 = vpop.f32.mrb[0].mxu0
        %v939 = vadd.f32 %v840, %v938
        %v940 = vpop.f32.mrb[0].mxu0
        %941 = vmatprep.mubr.f32.mxu0 0.0
        %v942 = vand.u32 %v452, 4294901760
        %943 = vmatmul.mubr.f32.gmra.mrb[0].mxu0 %v942
        %v944 = vpop.f32.mrb[0].mxu0
        %v945 = vadd.f32 %v848, %v944
        %v946 = vpop.f32.mrb[0].mxu0
        %947 = vmatprep.mubr.f32.mxu0 0.0
        %v948 = vand.u32 %v455, 4294901760
        %949 = vmatmul.mubr.f32.gmra.mrb[0].mxu0 %v948
        %v950 = vpop.f32.mrb[0].mxu0
        %v951 = vadd.f32 %v856, %v950
        %v952 = vpop.f32.mrb[0].mxu0
        %953 = vdwg.mxu0
        %954 = vmatprep.subr.mxu0 0.0
        %v955 = vand.u32 %v414, 4294901760
        %956 = vmatpush1.msra.mxu0 %v955
        %957 = vmatprep.subr.mxu0 0.0
        %v958 = vand.u32 %v415, 4294901760
        %959 = vmatpush1.msra.mxu0 %v958
        %960 = vmatprep.subr.mxu0 0.0
        %961 = vmatpush1.msra.mxu0 0.0
        %962 = vmatprep.subr.mxu0 0.0
        %963 = vmatpush1.msra.mxu0 0.0
        %964 = vmatprep.subr.mxu0 0.0
        %965 = vmatpush1.msra.mxu0 0.0
        %966 = vmatprep.subr.mxu0 0.0
        %967 = vmatpush1.msra.mxu0 0.0
        %968 = vmatprep.subr.mxu0 0.0
        %969 = vmatpush1.msra.mxu0 0.0
        %970 = vmatprep.subr.mxu0 0.0
        %971 = vmatpush1.msra.mxu0 0.0
        %972 = vmatprep.subr.mxu0 0.0
        %973 = vmatpush1.msra.mxu0 0.0
        %974 = vmatprep.subr.mxu0 0.0
        %975 = vmatpush1.msra.mxu0 0.0
        %976 = vmatprep.subr.mxu0 0.0
        %977 = vmatpush1.msra.mxu0 0.0
        %978 = vmatprep.subr.mxu0 0.0
        %979 = vmatpush1.msra.mxu0 0.0
        %980 = vmatprep.subr.mxu0 0.0
        %981 = vmatpush1.msra.mxu0 0.0
        %982 = vmatprep.subr.mxu0 0.0
        %983 = vmatpush1.msra.mxu0 0.0
        %984 = vmatprep.subr.mxu0 0.0
        %985 = vmatpush1.msra.mxu0 0.0
        %986 = vmatprep.subr.mxu0 0.0
        %987 = vmatpush1.msra.mxu0 0.0
        %988 = vmatprep.subr.mxu0 0.0
        %989 = vmatpush1.msra.mxu0 0.0
        %990 = vmatprep.subr.mxu0 0.0
        %991 = vmatpush1.msra.mxu0 0.0
        %992 = vmatprep.subr.mxu0 0.0
        %993 = vmatpush1.msra.mxu0 0.0
        %994 = vmatprep.subr.mxu0 0.0
        %995 = vmatpush1.msra.mxu0 0.0
        %996 = vmatprep.subr.mxu0 0.0
        %997 = vmatpush1.msra.mxu0 0.0
        %998 = vmatprep.subr.mxu0 0.0
        %999 = vmatpush1.msra.mxu0 0.0
        %1000 = vmatprep.subr.mxu0 0.0
        %1001 = vmatpush1.msra.mxu0 0.0
        %1002 = vmatprep.subr.mxu0 0.0
        %1003 = vmatpush1.msra.mxu0 0.0
        %1004 = vmatprep.subr.mxu0 0.0
        %1005 = vmatpush1.msra.mxu0 0.0
        %1006 = vmatprep.subr.mxu0 0.0
        %1007 = vmatpush1.msra.mxu0 0.0
        %1008 = vmatprep.subr.mxu0 0.0
        %1009 = vmatpush1.msra.mxu0 0.0
        %1010 = vmatprep.subr.mxu0 0.0
        %1011 = vmatpush1.msra.mxu0 0.0
        %1012 = vmatprep.subr.mxu0 0.0
        %1013 = vmatpush1.msra.mxu0 0.0
        %1014 = vmatprep.subr.mxu0 0.0
        %1015 = vmatpush1.msra.mxu0 0.0
        %1016 = vmatprep.subr.mxu0 0.0
        %1017 = vmatpush1.msra.mxu0 0.0
        %1018 = vmatprep.subr.mxu0 0.0
        %1019 = vmatpush1.msra.mxu0 0.0
        %1020 = vmatprep.mubr.f32.mxu0 0.0
        %v1021 = vand.u32 %v446, 4294901760
        %1022 = vmatmul.mubr.f32.gmra.mrb[0].mxu0 %v1021
        %v1023 = vpop.f32.mrb[0].mxu0
        %v1024 = vadd.f32 %v933, %v1023
        %v1025 = vpop.f32.mrb[0].mxu0
        %1026 = vmatprep.mubr.f32.mxu0 0.0
        %v1027 = vand.u32 %v449, 4294901760
        %1028 = vmatmul.mubr.f32.gmra.mrb[0].mxu0 %v1027
        %v1029 = vpop.f32.mrb[0].mxu0
        %v1030 = vadd.f32 %v939, %v1029
        %v1031 = vpop.f32.mrb[0].mxu0
        %1032 = vmatprep.mubr.f32.mxu0 0.0
        %v1033 = vand.u32 %v452, 4294901760
        %1034 = vmatmul.mubr.f32.gmra.mrb[0].mxu0 %v1033
        %v1035 = vpop.f32.mrb[0].mxu0
        %v1036 = vadd.f32 %v945, %v1035
        %v1037 = vpop.f32.mrb[0].mxu0
        %1038 = vmatprep.mubr.f32.mxu0 0.0
        %v1039 = vand.u32 %v455, 4294901760
        %1040 = vmatmul.mubr.f32.gmra.mrb[0].mxu0 %v1039
        %v1041 = vpop.f32.mrb[0].mxu0
        %v1042 = vadd.f32 %v951, %v1041
        %v1043 = vpop.f32.mrb[0].mxu0
        %1044 = vdwg.mxu0
        %s1045 = sld [smem:[#allocation5 + %s413]]
        %vm1046 = vcmp.ge.f32.partialorder %v1024, 0.0
        %vm1047 = vcmp.ge.f32.partialorder %v1030, 0.0
        %vm1048 = vcmp.ge.f32.partialorder %v1036, 0.0
        %vm1049 = vcmp.ge.f32.partialorder %v1042, 0.0
        %v1050 = vstv %s1045
        %v1051 = vmul.f32 %v1050, %v1024
        %v1052 = vmul.f32 %v1050, %v1030
        %v1053 = vmul.f32 %v1050, %v1036
        %v1054 = vmul.f32 %v1050, %v1042
        %v1055 = vsel %vm1046, %v1024, %v1051
        %v1056 = vsel %vm1047, %v1030, %v1052
        %v1057 = vsel %vm1048, %v1036, %v1053
        %v1058 = vsel %vm1049, %v1042, %v1054
        %v1059 = vld [vmem:[%s404] sm:$0xff]
        %v1060 = vld [vmem:[%s404 + $0x8] sm:$0xff]
        %v1061 = vld [vmem:[%s404 + $0x10] sm:$0xff]
        %v1062 = vld [vmem:[%s404 + $0x18] sm:$0xff]
        %v1063 = vld [vmem:[%s411] sm:$0xff]
        %v1064 = vld [vmem:[%s411 + $0x8] sm:$0xff]
        %v1065 = vld [vmem:[%s411 + $0x10] sm:$0xff]
        %v1066 = vld [vmem:[%s411 + $0x18] sm:$0xff]
        %1068 = vset.pattern.permute.xlu0 0
        %1069 = vperm.xlu0 %1068, %v1063
        %v1070 = vpop.permute.xlu0 %1069
        %1073 = vset.pattern.permute.xlu0 0
        %1074 = vperm.xlu0 %1073, %v1064
        %v1075 = vpop.permute.xlu0 %1074
        %1078 = vset.pattern.permute.xlu0 0
        %1079 = vperm.xlu0 %1078, %v1065
        %v1080 = vpop.permute.xlu0 %1079
        %1083 = vset.pattern.permute.xlu0 0
        %1084 = vperm.xlu0 %1083, %v1066
        %v1085 = vpop.permute.xlu0 %1084
        %vm1087 = vcmask 261120
        %v1089 = vsel %vm1087, %v1059, 0
        %v1092 = vsel %vm1087, %v1060, 0
        %v1095 = vsel %vm1087, %v1061, 0
        %v1098 = vsel %vm1087, %v1062, 0
        %1100 = vmatprep.subr.mxu0 0.0
        %v1101 = vand.u32 %v1055, 4294901760
        %1102 = vmatpush1.msra.mxu0 %v1101
        %1103 = vmatprep.subr.mxu0 0.0
        %v1104 = vand.u32 %v1056, 4294901760
        %1105 = vmatpush1.msra.mxu0 %v1104
        %1106 = vmatprep.subr.mxu0 0.0
        %v1107 = vand.u32 %v1057, 4294901760
        %1108 = vmatpush1.msra.mxu0 %v1107
        %1109 = vmatprep.subr.mxu0 0.0
        %v1110 = vand.u32 %v1058, 4294901760
        %1111 = vmatpush1.msra.mxu0 %v1110
        %1112 = vmatprep.subr.mxu0 0.0
        %1113 = vmatpush1.msra.mxu0 0.0
        %1114 = vmatprep.subr.mxu0 0.0
        %1115 = vmatpush1.msra.mxu0 0.0
        %1116 = vmatprep.subr.mxu0 0.0
        %1117 = vmatpush1.msra.mxu0 0.0
        %1118 = vmatprep.subr.mxu0 0.0
        %1119 = vmatpush1.msra.mxu0 0.0
        %1120 = vmatprep.subr.mxu0 0.0
        %1121 = vmatpush1.msra.mxu0 0.0
        %1122 = vmatprep.subr.mxu0 0.0
        %1123 = vmatpush1.msra.mxu0 0.0
        %1124 = vmatprep.subr.mxu0 0.0
        %1125 = vmatpush1.msra.mxu0 0.0
        %1126 = vmatprep.subr.mxu0 0.0
        %1127 = vmatpush1.msra.mxu0 0.0
        %1128 = vmatprep.subr.mxu0 0.0
        %1129 = vmatpush1.msra.mxu0 0.0
        %1130 = vmatprep.subr.mxu0 0.0
        %1131 = vmatpush1.msra.mxu0 0.0
        %1132 = vmatprep.subr.mxu0 0.0
        %1133 = vmatpush1.msra.mxu0 0.0
        %1134 = vmatprep.subr.mxu0 0.0
        %1135 = vmatpush1.msra.mxu0 0.0
        %1136 = vmatprep.subr.mxu0 0.0
        %1137 = vmatpush1.msra.mxu0 0.0
        %1138 = vmatprep.subr.mxu0 0.0
        %1139 = vmatpush1.msra.mxu0 0.0
        %1140 = vmatprep.subr.mxu0 0.0
        %1141 = vmatpush1.msra.mxu0 0.0
        %1142 = vmatprep.subr.mxu0 0.0
        %1143 = vmatpush1.msra.mxu0 0.0
        %1144 = vmatprep.subr.mxu0 0.0
        %1145 = vmatpush1.msra.mxu0 0.0
        %1146 = vmatprep.subr.mxu0 0.0
        %1147 = vmatpush1.msra.mxu0 0.0
        %1148 = vmatprep.subr.mxu0 0.0
        %1149 = vmatpush1.msra.mxu0 0.0
        %1150 = vmatprep.subr.mxu0 0.0
        %1151 = vmatpush1.msra.mxu0 0.0
        %1152 = vmatprep.subr.mxu0 0.0
        %1153 = vmatpush1.msra.mxu0 0.0
        %1154 = vmatprep.subr.mxu0 0.0
        %1155 = vmatpush1.msra.mxu0 0.0
        %1156 = vmatprep.subr.mxu0 0.0
        %1157 = vmatpush1.msra.mxu0 0.0
        %1158 = vmatprep.subr.mxu0 0.0
        %1159 = vmatpush1.msra.mxu0 0.0
        %1160 = vmatprep.subr.mxu0 0.0
        %1161 = vmatpush1.msra.mxu0 0.0
        %1162 = vmatprep.subr.mxu0 0.0
        %1163 = vmatpush1.msra.mxu0 0.0
        %1164 = vmatprep.subr.mxu0 0.0
        %1165 = vmatpush1.msra.mxu0 0.0
        %1166 = vmatprep.subr.mxu0 0.0
        %1167 = vmatpush1.msra.mxu0 0.0
        %1168 = vmatprep.mubr.f32.mxu0 0.0
        %v1169 = vand.u32 %v1089, 4294901760
        %v1170 = vsub.f32 %v1089, %v1169
        %v1171 = vand.u32 %v1170, 4294901760
        %v1172 = vsub.f32 %v1170, %v1171
        %v1173 = vand.u32 %v1172, 4294901760
        %1174 = vmatmul.mubr.f32.gmra.mrb[0].mxu0 %v1173
        %v1175 = vpop.f32.mrb[0].mxu0
        %v1176 = vadd.f32 %v1070, %v1175
        %v1177 = vpop.f32.mrb[0].mxu0
        %1178 = vmatprep.mubr.f32.mxu0 0.0
        %v1179 = vand.u32 %v1092, 4294901760
        %v1180 = vsub.f32 %v1092, %v1179
        %v1181 = vand.u32 %v1180, 4294901760
        %v1182 = vsub.f32 %v1180, %v1181
        %v1183 = vand.u32 %v1182, 4294901760
        %1184 = vmatmul.mubr.f32.gmra.mrb[0].mxu0 %v1183
        %v1185 = vpop.f32.mrb[0].mxu0
        %v1186 = vadd.f32 %v1075, %v1185
        %v1187 = vpop.f32.mrb[0].mxu0
        %1188 = vmatprep.mubr.f32.mxu0 0.0
        %v1189 = vand.u32 %v1095, 4294901760
        %v1190 = vsub.f32 %v1095, %v1189
        %v1191 = vand.u32 %v1190, 4294901760
        %v1192 = vsub.f32 %v1190, %v1191
        %v1193 = vand.u32 %v1192, 4294901760
        %1194 = vmatmul.mubr.f32.gmra.mrb[0].mxu0 %v1193
        %v1195 = vpop.f32.mrb[0].mxu0
        %v1196 = vadd.f32 %v1080, %v1195
        %v1197 = vpop.f32.mrb[0].mxu0
        %1198 = vmatprep.mubr.f32.mxu0 0.0
        %v1199 = vand.u32 %v1098, 4294901760
        %v1200 = vsub.f32 %v1098, %v1199
        %v1201 = vand.u32 %v1200, 4294901760
        %v1202 = vsub.f32 %v1200, %v1201
        %v1203 = vand.u32 %v1202, 4294901760
        %1204 = vmatmul.mubr.f32.gmra.mrb[0].mxu0 %v1203
        %v1205 = vpop.f32.mrb[0].mxu0
        %v1206 = vadd.f32 %v1085, %v1205
        %v1207 = vpop.f32.mrb[0].mxu0
        %1208 = vdwg.mxu0
        %1209 = vmatprep.subr.mxu0 0.0
        %v1210 = vand.u32 %v1055, 4294901760
        %v1211 = vsub.f32 %v1055, %v1210
        %v1212 = vand.u32 %v1211, 4294901760
        %v1213 = vsub.f32 %v1211, %v1212
        %v1214 = vand.u32 %v1213, 4294901760
        %1215 = vmatpush1.msra.mxu0 %v1214
        %1216 = vmatprep.subr.mxu0 0.0
        %v1217 = vand.u32 %v1056, 4294901760
        %v1218 = vsub.f32 %v1056, %v1217
        %v1219 = vand.u32 %v1218, 4294901760
        %v1220 = vsub.f32 %v1218, %v1219
        %v1221 = vand.u32 %v1220, 4294901760
        %1222 = vmatpush1.msra.mxu0 %v1221
        %1223 = vmatprep.subr.mxu0 0.0
        %v1224 = vand.u32 %v1057, 4294901760
        %v1225 = vsub.f32 %v1057, %v1224
        %v1226 = vand.u32 %v1225, 4294901760
        %v1227 = vsub.f32 %v1225, %v1226
        %v1228 = vand.u32 %v1227, 4294901760
        %1229 = vmatpush1.msra.mxu0 %v1228
        %1230 = vmatprep.subr.mxu0 0.0
        %v1231 = vand.u32 %v1058, 4294901760
        %v1232 = vsub.f32 %v1058, %v1231
        %v1233 = vand.u32 %v1232, 4294901760
        %v1234 = vsub.f32 %v1232, %v1233
        %v1235 = vand.u32 %v1234, 4294901760
        %1236 = vmatpush1.msra.mxu0 %v1235
        %1237 = vmatprep.subr.mxu0 0.0
        %1238 = vmatpush1.msra.mxu0 0.0
        %1239 = vmatprep.subr.mxu0 0.0
        %1240 = vmatpush1.msra.mxu0 0.0
        %1241 = vmatprep.subr.mxu0 0.0
        %1242 = vmatpush1.msra.mxu0 0.0
        %1243 = vmatprep.subr.mxu0 0.0
        %1244 = vmatpush1.msra.mxu0 0.0
        %1245 = vmatprep.subr.mxu0 0.0
        %1246 = vmatpush1.msra.mxu0 0.0
        %1247 = vmatprep.subr.mxu0 0.0
        %1248 = vmatpush1.msra.mxu0 0.0
        %1249 = vmatprep.subr.mxu0 0.0
        %1250 = vmatpush1.msra.mxu0 0.0
        %1251 = vmatprep.subr.mxu0 0.0
        %1252 = vmatpush1.msra.mxu0 0.0
        %1253 = vmatprep.subr.mxu0 0.0
        %1254 = vmatpush1.msra.mxu0 0.0
        %1255 = vmatprep.subr.mxu0 0.0
        %1256 = vmatpush1.msra.mxu0 0.0
        %1257 = vmatprep.subr.mxu0 0.0
        %1258 = vmatpush1.msra.mxu0 0.0
        %1259 = vmatprep.subr.mxu0 0.0
        %1260 = vmatpush1.msra.mxu0 0.0
        %1261 = vmatprep.subr.mxu0 0.0
        %1262 = vmatpush1.msra.mxu0 0.0
        %1263 = vmatprep.subr.mxu0 0.0
        %1264 = vmatpush1.msra.mxu0 0.0
        %1265 = vmatprep.subr.mxu0 0.0
        %1266 = vmatpush1.msra.mxu0 0.0
        %1267 = vmatprep.subr.mxu0 0.0
        %1268 = vmatpush1.msra.mxu0 0.0
        %1269 = vmatprep.subr.mxu0 0.0
        %1270 = vmatpush1.msra.mxu0 0.0
        %1271 = vmatprep.subr.mxu0 0.0
        %1272 = vmatpush1.msra.mxu0 0.0
        %1273 = vmatprep.subr.mxu0 0.0
        %1274 = vmatpush1.msra.mxu0 0.0
        %1275 = vmatprep.subr.mxu0 0.0
        %1276 = vmatpush1.msra.mxu0 0.0
        %1277 = vmatprep.subr.mxu0 0.0
        %1278 = vmatpush1.msra.mxu0 0.0
        %1279 = vmatprep.subr.mxu0 0.0
        %1280 = vmatpush1.msra.mxu0 0.0
        %1281 = vmatprep.subr.mxu0 0.0
        %1282 = vmatpush1.msra.mxu0 0.0
        %1283 = vmatprep.subr.mxu0 0.0
        %1284 = vmatpush1.msra.mxu0 0.0
        %1285 = vmatprep.subr.mxu0 0.0
        %1286 = vmatpush1.msra.mxu0 0.0
        %1287 = vmatprep.subr.mxu0 0.0
        %1288 = vmatpush1.msra.mxu0 0.0
        %1289 = vmatprep.subr.mxu0 0.0
        %1290 = vmatpush1.msra.mxu0 0.0
        %1291 = vmatprep.subr.mxu0 0.0
        %1292 = vmatpush1.msra.mxu0 0.0
        %1293 = vmatprep.mubr.f32.mxu0 0.0
        %v1294 = vand.u32 %v1089, 4294901760
        %1295 = vmatmul.mubr.f32.gmra.mrb[0].mxu0 %v1294
        %v1296 = vpop.f32.mrb[0].mxu0
        %v1297 = vadd.f32 %v1176, %v1296
        %v1298 = vpop.f32.mrb[0].mxu0
        %1299 = vmatprep.mubr.f32.mxu0 0.0
        %v1300 = vand.u32 %v1092, 4294901760
        %1301 = vmatmul.mubr.f32.gmra.mrb[0].mxu0 %v1300
        %v1302 = vpop.f32.mrb[0].mxu0
        %v1303 = vadd.f32 %v1186, %v1302
        %v1304 = vpop.f32.mrb[0].mxu0
        %1305 = vmatprep.mubr.f32.mxu0 0.0
        %v1306 = vand.u32 %v1095, 4294901760
        %1307 = vmatmul.mubr.f32.gmra.mrb[0].mxu0 %v1306
        %v1308 = vpop.f32.mrb[0].mxu0
        %v1309 = vadd.f32 %v1196, %v1308
        %v1310 = vpop.f32.mrb[0].mxu0
        %1311 = vmatprep.mubr.f32.mxu0 0.0
        %v1312 = vand.u32 %v1098, 4294901760
        %1313 = vmatmul.mubr.f32.gmra.mrb[0].mxu0 %v1312
        %v1314 = vpop.f32.mrb[0].mxu0
        %v1315 = vadd.f32 %v1206, %v1314
        %v1316 = vpop.f32.mrb[0].mxu0
        %1317 = vdwg.mxu0
        %1318 = vmatprep.subr.mxu0 0.0
        %v1319 = vand.u32 %v1055, 4294901760
        %v1320 = vsub.f32 %v1055, %v1319
        %1321 = vmatpush1.msra.mxu0 %v1320
        %1322 = vmatprep.subr.mxu0 0.0
        %v1323 = vand.u32 %v1056, 4294901760
        %v1324 = vsub.f32 %v1056, %v1323
        %1325 = vmatpush1.msra.mxu0 %v1324
        %1326 = vmatprep.subr.mxu0 0.0
        %v1327 = vand.u32 %v1057, 4294901760
        %v1328 = vsub.f32 %v1057, %v1327
        %1329 = vmatpush1.msra.mxu0 %v1328
        %1330 = vmatprep.subr.mxu0 0.0
        %v1331 = vand.u32 %v1058, 4294901760
        %v1332 = vsub.f32 %v1058, %v1331
        %1333 = vmatpush1.msra.mxu0 %v1332
        %1334 = vmatprep.subr.mxu0 0.0
        %1335 = vmatpush1.msra.mxu0 0.0
        %1336 = vmatprep.subr.mxu0 0.0
        %1337 = vmatpush1.msra.mxu0 0.0
        %1338 = vmatprep.subr.mxu0 0.0
        %1339 = vmatpush1.msra.mxu0 0.0
        %1340 = vmatprep.subr.mxu0 0.0
        %1341 = vmatpush1.msra.mxu0 0.0
        %1342 = vmatprep.subr.mxu0 0.0
        %1343 = vmatpush1.msra.mxu0 0.0
        %1344 = vmatprep.subr.mxu0 0.0
        %1345 = vmatpush1.msra.mxu0 0.0
        %1346 = vmatprep.subr.mxu0 0.0
        %1347 = vmatpush1.msra.mxu0 0.0
        %1348 = vmatprep.subr.mxu0 0.0
        %1349 = vmatpush1.msra.mxu0 0.0
        %1350 = vmatprep.subr.mxu0 0.0
        %1351 = vmatpush1.msra.mxu0 0.0
        %1352 = vmatprep.subr.mxu0 0.0
        %1353 = vmatpush1.msra.mxu0 0.0
        %1354 = vmatprep.subr.mxu0 0.0
        %1355 = vmatpush1.msra.mxu0 0.0
        %1356 = vmatprep.subr.mxu0 0.0
        %1357 = vmatpush1.msra.mxu0 0.0
        %1358 = vmatprep.subr.mxu0 0.0
        %1359 = vmatpush1.msra.mxu0 0.0
        %1360 = vmatprep.subr.mxu0 0.0
        %1361 = vmatpush1.msra.mxu0 0.0
        %1362 = vmatprep.subr.mxu0 0.0
        %1363 = vmatpush1.msra.mxu0 0.0
        %1364 = vmatprep.subr.mxu0 0.0
        %1365 = vmatpush1.msra.mxu0 0.0
        %1366 = vmatprep.subr.mxu0 0.0
        %1367 = vmatpush1.msra.mxu0 0.0
        %1368 = vmatprep.subr.mxu0 0.0
        %1369 = vmatpush1.msra.mxu0 0.0
        %1370 = vmatprep.subr.mxu0 0.0
        %1371 = vmatpush1.msra.mxu0 0.0
        %1372 = vmatprep.subr.mxu0 0.0
        %1373 = vmatpush1.msra.mxu0 0.0
        %1374 = vmatprep.subr.mxu0 0.0
        %1375 = vmatpush1.msra.mxu0 0.0
        %1376 = vmatprep.subr.mxu0 0.0
        %1377 = vmatpush1.msra.mxu0 0.0
        %1378 = vmatprep.subr.mxu0 0.0
        %1379 = vmatpush1.msra.mxu0 0.0
        %1380 = vmatprep.subr.mxu0 0.0
        %1381 = vmatpush1.msra.mxu0 0.0
        %1382 = vmatprep.subr.mxu0 0.0
        %1383 = vmatpush1.msra.mxu0 0.0
        %1384 = vmatprep.subr.mxu0 0.0
        %1385 = vmatpush1.msra.mxu0 0.0
        %1386 = vmatprep.subr.mxu0 0.0
        %1387 = vmatpush1.msra.mxu0 0.0
        %1388 = vmatprep.subr.mxu0 0.0
        %1389 = vmatpush1.msra.mxu0 0.0
        %1390 = vmatprep.mubr.f32.mxu0 0.0
        %v1391 = vand.u32 %v1089, 4294901760
        %v1392 = vsub.f32 %v1089, %v1391
        %1393 = vmatmul.mubr.f32.gmra.mrb[0].mxu0 %v1392
        %v1394 = vpop.f32.mrb[0].mxu0
        %v1395 = vadd.f32 %v1297, %v1394
        %v1396 = vpop.f32.mrb[0].mxu0
        %1397 = vmatprep.mubr.f32.mxu0 0.0
        %v1398 = vand.u32 %v1092, 4294901760
        %v1399 = vsub.f32 %v1092, %v1398
        %1400 = vmatmul.mubr.f32.gmra.mrb[0].mxu0 %v1399
        %v1401 = vpop.f32.mrb[0].mxu0
        %v1402 = vadd.f32 %v1303, %v1401
        %v1403 = vpop.f32.mrb[0].mxu0
        %1404 = vmatprep.mubr.f32.mxu0 0.0
        %v1405 = vand.u32 %v1095, 4294901760
        %v1406 = vsub.f32 %v1095, %v1405
        %1407 = vmatmul.mubr.f32.gmra.mrb[0].mxu0 %v1406
        %v1408 = vpop.f32.mrb[0].mxu0
        %v1409 = vadd.f32 %v1309, %v1408
        %v1410 = vpop.f32.mrb[0].mxu0
        %1411 = vmatprep.mubr.f32.mxu0 0.0
        %v1412 = vand.u32 %v1098, 4294901760
        %v1413 = vsub.f32 %v1098, %v1412
        %1414 = vmatmul.mubr.f32.gmra.mrb[0].mxu0 %v1413
        %v1415 = vpop.f32.mrb[0].mxu0
        %v1416 = vadd.f32 %v1315, %v1415
        %v1417 = vpop.f32.mrb[0].mxu0
        %1418 = vdwg.mxu0
        %1419 = vmatprep.subr.mxu0 0.0
        %v1420 = vand.u32 %v1055, 4294901760
        %1421 = vmatpush1.msra.mxu0 %v1420
        %1422 = vmatprep.subr.mxu0 0.0
        %v1423 = vand.u32 %v1056, 4294901760
        %1424 = vmatpush1.msra.mxu0 %v1423
        %1425 = vmatprep.subr.mxu0 0.0
        %v1426 = vand.u32 %v1057, 4294901760
        %1427 = vmatpush1.msra.mxu0 %v1426
        %1428 = vmatprep.subr.mxu0 0.0
        %v1429 = vand.u32 %v1058, 4294901760
        %1430 = vmatpush1.msra.mxu0 %v1429
        %1431 = vmatprep.subr.mxu0 0.0
        %1432 = vmatpush1.msra.mxu0 0.0
        %1433 = vmatprep.subr.mxu0 0.0
        %1434 = vmatpush1.msra.mxu0 0.0
        %1435 = vmatprep.subr.mxu0 0.0
        %1436 = vmatpush1.msra.mxu0 0.0
        %1437 = vmatprep.subr.mxu0 0.0
        %1438 = vmatpush1.msra.mxu0 0.0
        %1439 = vmatprep.subr.mxu0 0.0
        %1440 = vmatpush1.msra.mxu0 0.0
        %1441 = vmatprep.subr.mxu0 0.0
        %1442 = vmatpush1.msra.mxu0 0.0
        %1443 = vmatprep.subr.mxu0 0.0
        %1444 = vmatpush1.msra.mxu0 0.0
        %1445 = vmatprep.subr.mxu0 0.0
        %1446 = vmatpush1.msra.mxu0 0.0
        %1447 = vmatprep.subr.mxu0 0.0
        %1448 = vmatpush1.msra.mxu0 0.0
        %1449 = vmatprep.subr.mxu0 0.0
        %1450 = vmatpush1.msra.mxu0 0.0
        %1451 = vmatprep.subr.mxu0 0.0
        %1452 = vmatpush1.msra.mxu0 0.0
        %1453 = vmatprep.subr.mxu0 0.0
        %1454 = vmatpush1.msra.mxu0 0.0
        %1455 = vmatprep.subr.mxu0 0.0
        %1456 = vmatpush1.msra.mxu0 0.0
        %1457 = vmatprep.subr.mxu0 0.0
        %1458 = vmatpush1.msra.mxu0 0.0
        %1459 = vmatprep.subr.mxu0 0.0
        %1460 = vmatpush1.msra.mxu0 0.0
        %1461 = vmatprep.subr.mxu0 0.0
        %1462 = vmatpush1.msra.mxu0 0.0
        %1463 = vmatprep.subr.mxu0 0.0
        %1464 = vmatpush1.msra.mxu0 0.0
        %1465 = vmatprep.subr.mxu0 0.0
        %1466 = vmatpush1.msra.mxu0 0.0
        %1467 = vmatprep.subr.mxu0 0.0
        %1468 = vmatpush1.msra.mxu0 0.0
        %1469 = vmatprep.subr.mxu0 0.0
        %1470 = vmatpush1.msra.mxu0 0.0
        %1471 = vmatprep.subr.mxu0 0.0
        %1472 = vmatpush1.msra.mxu0 0.0
        %1473 = vmatprep.subr.mxu0 0.0
        %1474 = vmatpush1.msra.mxu0 0.0
        %1475 = vmatprep.subr.mxu0 0.0
        %1476 = vmatpush1.msra.mxu0 0.0
        %1477 = vmatprep.subr.mxu0 0.0
        %1478 = vmatpush1.msra.mxu0 0.0
        %1479 = vmatprep.subr.mxu0 0.0
        %1480 = vmatpush1.msra.mxu0 0.0
        %1481 = vmatprep.subr.mxu0 0.0
        %1482 = vmatpush1.msra.mxu0 0.0
        %1483 = vmatprep.subr.mxu0 0.0
        %1484 = vmatpush1.msra.mxu0 0.0
        %1485 = vmatprep.subr.mxu0 0.0
        %1486 = vmatpush1.msra.mxu0 0.0
        %1487 = vmatprep.mubr.f32.mxu0 0.0
        %v1488 = vand.u32 %v1089, 4294901760
        %v1489 = vsub.f32 %v1089, %v1488
        %v1490 = vand.u32 %v1489, 4294901760
        %1491 = vmatmul.mubr.f32.gmra.mrb[0].mxu0 %v1490
        %v1492 = vpop.f32.mrb[0].mxu0
        %v1493 = vadd.f32 %v1395, %v1492
        %v1494 = vpop.f32.mrb[0].mxu0
        %1495 = vmatprep.mubr.f32.mxu0 0.0
        %v1496 = vand.u32 %v1092, 4294901760
        %v1497 = vsub.f32 %v1092, %v1496
        %v1498 = vand.u32 %v1497, 4294901760
        %1499 = vmatmul.mubr.f32.gmra.mrb[0].mxu0 %v1498
        %v1500 = vpop.f32.mrb[0].mxu0
        %v1501 = vadd.f32 %v1402, %v1500
        %v1502 = vpop.f32.mrb[0].mxu0
        %1503 = vmatprep.mubr.f32.mxu0 0.0
        %v1504 = vand.u32 %v1095, 4294901760
        %v1505 = vsub.f32 %v1095, %v1504
        %v1506 = vand.u32 %v1505, 4294901760
        %1507 = vmatmul.mubr.f32.gmra.mrb[0].mxu0 %v1506
        %v1508 = vpop.f32.mrb[0].mxu0
        %v1509 = vadd.f32 %v1409, %v1508
        %v1510 = vpop.f32.mrb[0].mxu0
        %1511 = vmatprep.mubr.f32.mxu0 0.0
        %v1512 = vand.u32 %v1098, 4294901760
        %v1513 = vsub.f32 %v1098, %v1512
        %v1514 = vand.u32 %v1513, 4294901760
        %1515 = vmatmul.mubr.f32.gmra.mrb[0].mxu0 %v1514
        %v1516 = vpop.f32.mrb[0].mxu0
        %v1517 = vadd.f32 %v1416, %v1516
        %v1518 = vpop.f32.mrb[0].mxu0
        %1519 = vdwg.mxu0
        %1520 = vmatprep.subr.mxu0 0.0
        %v1521 = vand.u32 %v1055, 4294901760
        %v1522 = vsub.f32 %v1055, %v1521
        %v1523 = vand.u32 %v1522, 4294901760
        %1524 = vmatpush1.msra.mxu0 %v1523
        %1525 = vmatprep.subr.mxu0 0.0
        %v1526 = vand.u32 %v1056, 4294901760
        %v1527 = vsub.f32 %v1056, %v1526
        %v1528 = vand.u32 %v1527, 4294901760
        %1529 = vmatpush1.msra.mxu0 %v1528
        %1530 = vmatprep.subr.mxu0 0.0
        %v1531 = vand.u32 %v1057, 4294901760
        %v1532 = vsub.f32 %v1057, %v1531
        %v1533 = vand.u32 %v1532, 4294901760
        %1534 = vmatpush1.msra.mxu0 %v1533
        %1535 = vmatprep.subr.mxu0 0.0
        %v1536 = vand.u32 %v1058, 4294901760
        %v1537 = vsub.f32 %v1058, %v1536
        %v1538 = vand.u32 %v1537, 4294901760
        %1539 = vmatpush1.msra.mxu0 %v1538
        %1540 = vmatprep.subr.mxu0 0.0
        %1541 = vmatpush1.msra.mxu0 0.0
        %1542 = vmatprep.subr.mxu0 0.0
        %1543 = vmatpush1.msra.mxu0 0.0
        %1544 = vmatprep.subr.mxu0 0.0
        %1545 = vmatpush1.msra.mxu0 0.0
        %1546 = vmatprep.subr.mxu0 0.0
        %1547 = vmatpush1.msra.mxu0 0.0
        %1548 = vmatprep.subr.mxu0 0.0
        %1549 = vmatpush1.msra.mxu0 0.0
        %1550 = vmatprep.subr.mxu0 0.0
        %1551 = vmatpush1.msra.mxu0 0.0
        %1552 = vmatprep.subr.mxu0 0.0
        %1553 = vmatpush1.msra.mxu0 0.0
        %1554 = vmatprep.subr.mxu0 0.0
        %1555 = vmatpush1.msra.mxu0 0.0
        %1556 = vmatprep.subr.mxu0 0.0
        %1557 = vmatpush1.msra.mxu0 0.0
        %1558 = vmatprep.subr.mxu0 0.0
        %1559 = vmatpush1.msra.mxu0 0.0
        %1560 = vmatprep.subr.mxu0 0.0
        %1561 = vmatpush1.msra.mxu0 0.0
        %1562 = vmatprep.subr.mxu0 0.0
        %1563 = vmatpush1.msra.mxu0 0.0
        %1564 = vmatprep.subr.mxu0 0.0
        %1565 = vmatpush1.msra.mxu0 0.0
        %1566 = vmatprep.subr.mxu0 0.0
        %1567 = vmatpush1.msra.mxu0 0.0
        %1568 = vmatprep.subr.mxu0 0.0
        %1569 = vmatpush1.msra.mxu0 0.0
        %1570 = vmatprep.subr.mxu0 0.0
        %1571 = vmatpush1.msra.mxu0 0.0
        %1572 = vmatprep.subr.mxu0 0.0
        %1573 = vmatpush1.msra.mxu0 0.0
        %1574 = vmatprep.subr.mxu0 0.0
        %1575 = vmatpush1.msra.mxu0 0.0
        %1576 = vmatprep.subr.mxu0 0.0
        %1577 = vmatpush1.msra.mxu0 0.0
        %1578 = vmatprep.subr.mxu0 0.0
        %1579 = vmatpush1.msra.mxu0 0.0
        %1580 = vmatprep.subr.mxu0 0.0
        %1581 = vmatpush1.msra.mxu0 0.0
        %1582 = vmatprep.subr.mxu0 0.0
        %1583 = vmatpush1.msra.mxu0 0.0
        %1584 = vmatprep.subr.mxu0 0.0
        %1585 = vmatpush1.msra.mxu0 0.0
        %1586 = vmatprep.subr.mxu0 0.0
        %1587 = vmatpush1.msra.mxu0 0.0
        %1588 = vmatprep.subr.mxu0 0.0
        %1589 = vmatpush1.msra.mxu0 0.0
        %1590 = vmatprep.subr.mxu0 0.0
        %1591 = vmatpush1.msra.mxu0 0.0
        %1592 = vmatprep.subr.mxu0 0.0
        %1593 = vmatpush1.msra.mxu0 0.0
        %1594 = vmatprep.subr.mxu0 0.0
        %1595 = vmatpush1.msra.mxu0 0.0
        %1596 = vmatprep.mubr.f32.mxu0 0.0
        %v1597 = vand.u32 %v1089, 4294901760
        %1598 = vmatmul.mubr.f32.gmra.mrb[0].mxu0 %v1597
        %v1599 = vpop.f32.mrb[0].mxu0
        %v1600 = vadd.f32 %v1493, %v1599
        %v1601 = vpop.f32.mrb[0].mxu0
        %1602 = vmatprep.mubr.f32.mxu0 0.0
        %v1603 = vand.u32 %v1092, 4294901760
        %1604 = vmatmul.mubr.f32.gmra.mrb[0].mxu0 %v1603
        %v1605 = vpop.f32.mrb[0].mxu0
        %v1606 = vadd.f32 %v1501, %v1605
        %v1607 = vpop.f32.mrb[0].mxu0
        %1608 = vmatprep.mubr.f32.mxu0 0.0
        %v1609 = vand.u32 %v1095, 4294901760
        %1610 = vmatmul.mubr.f32.gmra.mrb[0].mxu0 %v1609
        %v1611 = vpop.f32.mrb[0].mxu0
        %v1612 = vadd.f32 %v1509, %v1611
        %v1613 = vpop.f32.mrb[0].mxu0
        %1614 = vmatprep.mubr.f32.mxu0 0.0
        %v1615 = vand.u32 %v1098, 4294901760
        %1616 = vmatmul.mubr.f32.gmra.mrb[0].mxu0 %v1615
        %v1617 = vpop.f32.mrb[0].mxu0
        %v1618 = vadd.f32 %v1517, %v1617
        %v1619 = vpop.f32.mrb[0].mxu0
        %1620 = vdwg.mxu0
        %1621 = vmatprep.subr.mxu0 0.0
        %v1622 = vand.u32 %v1055, 4294901760
        %1623 = vmatpush1.msra.mxu0 %v1622
        %1624 = vmatprep.subr.mxu0 0.0
        %v1625 = vand.u32 %v1056, 4294901760
        %1626 = vmatpush1.msra.mxu0 %v1625
        %1627 = vmatprep.subr.mxu0 0.0
        %v1628 = vand.u32 %v1057, 4294901760
        %1629 = vmatpush1.msra.mxu0 %v1628
        %1630 = vmatprep.subr.mxu0 0.0
        %v1631 = vand.u32 %v1058, 4294901760
        %1632 = vmatpush1.msra.mxu0 %v1631
        %1633 = vmatprep.subr.mxu0 0.0
        %1634 = vmatpush1.msra.mxu0 0.0
        %1635 = vmatprep.subr.mxu0 0.0
        %1636 = vmatpush1.msra.mxu0 0.0
        %1637 = vmatprep.subr.mxu0 0.0
        %1638 = vmatpush1.msra.mxu0 0.0
        %1639 = vmatprep.subr.mxu0 0.0
        %1640 = vmatpush1.msra.mxu0 0.0
        %1641 = vmatprep.subr.mxu0 0.0
        %1642 = vmatpush1.msra.mxu0 0.0
        %1643 = vmatprep.subr.mxu0 0.0
        %1644 = vmatpush1.msra.mxu0 0.0
        %1645 = vmatprep.subr.mxu0 0.0
        %1646 = vmatpush1.msra.mxu0 0.0
        %1647 = vmatprep.subr.mxu0 0.0
        %1648 = vmatpush1.msra.mxu0 0.0
        %1649 = vmatprep.subr.mxu0 0.0
        %1650 = vmatpush1.msra.mxu0 0.0
        %1651 = vmatprep.subr.mxu0 0.0
        %1652 = vmatpush1.msra.mxu0 0.0
        %1653 = vmatprep.subr.mxu0 0.0
        %1654 = vmatpush1.msra.mxu0 0.0
        %1655 = vmatprep.subr.mxu0 0.0
        %1656 = vmatpush1.msra.mxu0 0.0
        %1657 = vmatprep.subr.mxu0 0.0
        %1658 = vmatpush1.msra.mxu0 0.0
        %1659 = vmatprep.subr.mxu0 0.0
        %1660 = vmatpush1.msra.mxu0 0.0
        %1661 = vmatprep.subr.mxu0 0.0
        %1662 = vmatpush1.msra.mxu0 0.0
        %1663 = vmatprep.subr.mxu0 0.0
        %1664 = vmatpush1.msra.mxu0 0.0
        %1665 = vmatprep.subr.mxu0 0.0
        %1666 = vmatpush1.msra.mxu0 0.0
        %1667 = vmatprep.subr.mxu0 0.0
        %1668 = vmatpush1.msra.mxu0 0.0
        %1669 = vmatprep.subr.mxu0 0.0
        %1670 = vmatpush1.msra.mxu0 0.0
        %1671 = vmatprep.subr.mxu0 0.0
        %1672 = vmatpush1.msra.mxu0 0.0
        %1673 = vmatprep.subr.mxu0 0.0
        %1674 = vmatpush1.msra.mxu0 0.0
        %1675 = vmatprep.subr.mxu0 0.0
        %1676 = vmatpush1.msra.mxu0 0.0
        %1677 = vmatprep.subr.mxu0 0.0
        %1678 = vmatpush1.msra.mxu0 0.0
        %1679 = vmatprep.subr.mxu0 0.0
        %1680 = vmatpush1.msra.mxu0 0.0
        %1681 = vmatprep.subr.mxu0 0.0
        %1682 = vmatpush1.msra.mxu0 0.0
        %1683 = vmatprep.subr.mxu0 0.0
        %1684 = vmatpush1.msra.mxu0 0.0
        %1685 = vmatprep.subr.mxu0 0.0
        %1686 = vmatpush1.msra.mxu0 0.0
        %1687 = vmatprep.subr.mxu0 0.0
        %1688 = vmatpush1.msra.mxu0 0.0
        %1689 = vmatprep.mubr.f32.mxu0 0.0
        %v1690 = vand.u32 %v1089, 4294901760
        %1691 = vmatmul.mubr.f32.gmra.mrb[0].mxu0 %v1690
        %v1692 = vpop.f32.mrb[0].mxu0
        %v1693 = vadd.f32 %v1600, %v1692
        %v1694 = vpop.f32.mrb[0].mxu0
        %1695 = vmatprep.mubr.f32.mxu0 0.0
        %v1696 = vand.u32 %v1092, 4294901760
        %1697 = vmatmul.mubr.f32.gmra.mrb[0].mxu0 %v1696
        %v1698 = vpop.f32.mrb[0].mxu0
        %v1699 = vadd.f32 %v1606, %v1698
        %v1700 = vpop.f32.mrb[0].mxu0
        %1701 = vmatprep.mubr.f32.mxu0 0.0
        %v1702 = vand.u32 %v1095, 4294901760
        %1703 = vmatmul.mubr.f32.gmra.mrb[0].mxu0 %v1702
        %v1704 = vpop.f32.mrb[0].mxu0
        %v1705 = vadd.f32 %v1612, %v1704
        %v1706 = vpop.f32.mrb[0].mxu0
        %1707 = vmatprep.mubr.f32.mxu0 0.0
        %v1708 = vand.u32 %v1098, 4294901760
        %1709 = vmatmul.mubr.f32.gmra.mrb[0].mxu0 %v1708
        %v1710 = vpop.f32.mrb[0].mxu0
        %v1711 = vadd.f32 %v1618, %v1710
        %v1712 = vpop.f32.mrb[0].mxu0
        %1713 = vdwg.mxu0
        %1714 = vst [vmem:[%s384] sm:$0xff] %v1693
        %1715 = vst [vmem:[%s384 + $0x8] sm:$0xff] %v1699
        %1716 = vst [vmem:[%s384 + $0x10] sm:$0xff] %v1705
        %1717 = vst [vmem:[%s384 + $0x18] sm:$0xff] %v1711
        %s1718 = sand.u32 %s192, 1
        %s1719 = sand.u32 %s192, 1
        %s1720 = smul.addr %s1719, 32
        %s1721 = scalar_lea.vmem [#allocation7], %s1720
        // Predicated region
        $region87: #{_encoder_forward.1} parent=77 // pred_check
          %p1722 = pneg %p202
        $region88: #{_encoder_forward.1} parent=77 // pred_check_branch
          %1724 = sbr.rel (%p1722) target = $region90
        $region89: #{_encoder_forward.1} parent=77 // pred_region
          %s1725 = smul.addr %s25, 8
          %s1726 = scalar_lea.vmem %s7, %s1725
          // Predicated region
          $region91: #{_encoder_forward.1} parent=89 // pred_check
            _
          $region92: #{_encoder_forward.1} parent=89 // pred_check_branch
            %1728 = sbr.rel (0) target = $region94
          $region93: #{_encoder_forward.1} parent=89 // pred_region
            // Predicated region
            $region95: #{_encoder_forward.1} parent=93 // pred_check
              _
            $region96: #{_encoder_forward.1} parent=93 // pred_check_branch
              %1730 = sbr.rel (0) target = $region98
            $region97: #{_encoder_forward.1} parent=93 // pred_region
              // Predicated region
              $region110: #{_encoder_forward.1} parent=97 // pred_check
                _
              $region111: #{_encoder_forward.1} parent=97 // pred_check_branch
                %1751 = sbr.rel (0) target = $region113
              $region112: #{_encoder_forward.1} parent=97 // pred_region
                loop: start=0, step=1, limit=1
                $region114: #{_encoder_forward.1} parent=112 // loop_pre_header
                  _
                $region115: #{_encoder_forward.1} parent=112 // loop_header
                  %s1753 = sphi 0, %s1757
                  %p1754 = scmp.ge.s32.totalorder %s1753, 1
                  %s1758 = sphi %s1721, %s1721
                  %s1759 = sphi %s1726, %s1726
                $region116: #{_encoder_forward.1} parent=112 // loop_header_branch
                  %1756 = sbr.rel (%p1754) target = $region120
                $region117: #{_encoder_forward.1} parent=112 // loop_body
                  %v1760 = vld [vmem:[%s1758] sm:$0xff]
                  %1761 = vst [vmem:[%s1759] sm:$0xff] %v1760
                  %v1762 = vld [vmem:[%s1758 + $0x8] sm:$0xff]
                  %1763 = vst [vmem:[%s1759 + $0x10] sm:$0xff] %v1762
                  %v1764 = vld [vmem:[%s1758 + $0x10] sm:$0xff]
                  %1765 = vst [vmem:[%s1759 + $0x20] sm:$0xff] %v1764
                  %v1766 = vld [vmem:[%s1758 + $0x18] sm:$0xff]
                  %1767 = vst [vmem:[%s1759 + $0x30] sm:$0xff] %v1766
                $region118: #{_encoder_forward.1} parent=112 // loop_footer
                  %s1757 = sadd.s32 1, %s1753
                $region119: #{_encoder_forward.1} parent=112 // loop_footer_branch
                  %1752 = sbr.rel target = $region115
                $region120: #{_encoder_forward.1} parent=112 // loop_exit
                  _
              $region113: #{_encoder_forward.1} parent=97 // pred_fallthru
                _
              // Predicated region
              $region121: #{_encoder_forward.1} parent=97 // pred_check
                _
              $region122: #{_encoder_forward.1} parent=97 // pred_check_branch
                %1769 = sbr.rel target = $region124
              $region123: #{_encoder_forward.1} parent=97 // pred_region
                _
              $region124: #{_encoder_forward.1} parent=97 // pred_fallthru
                _
            $region98: #{_encoder_forward.1} parent=93 // pred_fallthru
              _
            // Predicated region
            $region99: #{_encoder_forward.1} parent=93 // pred_check
              _
            $region100: #{_encoder_forward.1} parent=93 // pred_check_branch
              %1732 = sbr.rel target = $region102
            $region101: #{_encoder_forward.1} parent=93 // pred_region
              loop: start=0, step=1, limit=1
              $region103: #{_encoder_forward.1} parent=101 // loop_pre_header
                _
              $region104: #{_encoder_forward.1} parent=101 // loop_header
                %s1735 = sphi 0, %s1739
                %p1736 = scmp.ge.s32.totalorder %s1735, 1
                %s1740 = sphi %s1721, %s1721
                %s1741 = sphi %s1726, %s1726
              $region105: #{_encoder_forward.1} parent=101 // loop_header_branch
                %1738 = sbr.rel (%p1736) target = $region109
              $region106: #{_encoder_forward.1} parent=101 // loop_body
                %v1742 = vld [vmem:[%s1740] sm:$0xff]
                %1743 = vst [vmem:[%s1741] sm:$0xff] %v1742
                %v1744 = vld [vmem:[%s1740 + $0x8] sm:$0xff]
                %1745 = vst [vmem:[%s1741 + $0x10] sm:$0xff] %v1744
                %v1746 = vld [vmem:[%s1740 + $0x10] sm:$0xff]
                %1747 = vst [vmem:[%s1741 + $0x20] sm:$0xff] %v1746
                %v1748 = vld [vmem:[%s1740 + $0x18] sm:$0xff]
                %1749 = vst [vmem:[%s1741 + $0x30] sm:$0xff] %v1748
              $region107: #{_encoder_forward.1} parent=101 // loop_footer
                %s1739 = sadd.s32 1, %s1735
              $region108: #{_encoder_forward.1} parent=101 // loop_footer_branch
                %1734 = sbr.rel target = $region104
              $region109: #{_encoder_forward.1} parent=101 // loop_exit
                _
            $region102: #{_encoder_forward.1} parent=93 // pred_fallthru
              _
          $region94: #{_encoder_forward.1} parent=89 // pred_fallthru
            _
          %1770 = vnop
        $region90: #{_encoder_forward.1} parent=77 // pred_fallthru
          _
      $region78: #{_encoder_forward.1} parent=5 // pred_fallthru
        _
      %p1771 = scmp.le.s32.totalorder 2, %s20
      // Predicated region
      $region125: #{_encoder_forward.1} parent=5 // pred_check
        %p1772 = pneg %p1771
      $region126: #{_encoder_forward.1} parent=5 // pred_check_branch
        %1774 = sbr.rel (%p1772) target = $region128
      $region127: #{_encoder_forward.1} parent=5 // pred_region
        %s1775 = ssub.s32 %s20, 2
        // Predicated region
        $region129: #{_encoder_forward.1} parent=127 // pred_check
          %p1776 = pneg %p208
        $region130: #{_encoder_forward.1} parent=127 // pred_check_branch
          %1778 = sbr.rel (%p1776) target = $region132
        $region131: #{_encoder_forward.1} parent=127 // pred_region
          %s1779 = sand.u32 %s193, 1
          %s1780 = sand.u32 %s193, 1
          %s1781 = smul.addr %s1780, 32
          %s1782 = scalar_lea.vmem [#allocation7], %s1781
        $region132: #{_encoder_forward.1} parent=127 // pred_fallthru
          _
      $region128: #{_encoder_forward.1} parent=5 // pred_fallthru
        _
    $region6: #{_encoder_forward.1} parent=1 // loop_footer
      %s24 = sadd.s32 1, %s20
    $region7: #{_encoder_forward.1} parent=1 // loop_footer_branch
      %19 = sbr.rel target = $region3
    $region8: #{_encoder_forward.1} parent=1 // loop_exit
      _
    %1783 = vsyncpa [#allocation6], 1
    %s1784 = scalar_lea.sflag [#allocation6], 1
    %1785 = vsyncpa %s1784, 1

</llo_original>
